<compile_context>
chip_gen: v5e
topology: v5e:2x2
jax: 0.10.0
libtpu: 0.0.40
codegen_flags: <defaults>
</compile_context>

<pallas_src>
import functools

import jax
import jax.numpy as jnp
import numpy as np
from jax.experimental import pallas as pl
from jax.experimental.pallas import tpu as pltpu


def _eq_conv2d_kernel(*refs, KH, KW, stride, OH, OW, use_bias):
    if use_bias:
        x_ref, w_ref, b_ref, o_ref = refs
    else:
        x_ref, w_ref, o_ref = refs
        b_ref = None

    # x_ref block: (1, Hp, Wp, Cin) bf16 -- one padded NHWC image.
    x = x_ref[0].astype(jnp.float32)          # do shifted-slice relayouts in f32
    cin = x.shape[-1]

    # In-VMEM im2col: (OH*OW, KH*KW*Cin), K ordered (kh, kw, cin) to match w_ref.
    cols = []
    for kh in range(KH):
        for kw in range(KW):
            sl = x[kh:kh + (OH - 1) * stride + 1:stride,
                   kw:kw + (OW - 1) * stride + 1:stride, :]        # (OH, OW, Cin)
            cols.append(sl.reshape(OH * OW, cin))
    patches = jnp.concatenate(cols, axis=-1).astype(jnp.bfloat16)  # (M, K) bf16

    # bf16 MXU matmul, f32 accumulation. Weight already carries the eq-lr scale.
    acc = jnp.dot(patches, w_ref[...], preferred_element_type=jnp.float32)  # (M, Cout)
    if use_bias:
        acc = acc + b_ref[...]                                     # (1, Cout) broadcast

    # Lane-dense store: (Cout, OH*OW) block, last dim a multiple of 128 here.
    o_ref[0] = acc.T.astype(o_ref.dtype)


def equalized_conv2d(x_nchw, weight_oihw, bias=None, *, stride=1, pad=0,
                     use_bias=True):
    """Forward pass of msggan `_equalized_conv2d`.

    x_nchw:      (N, Cin, H, W)      float32
    weight_oihw: (Cout, Cin, KH, KW) float32 (un-scaled nn.Parameter)
    bias:        (Cout,)             float32 (ignored if use_bias=False)
    Returns (N, Cout, OH, OW) float32.
    """
    N, Cin, H, W = x_nchw.shape
    Cout, Cin_w, KH, KW = weight_oihw.shape
    assert Cin == Cin_w
    fan_in = KH * KW * Cin
    scale = float(np.sqrt(2.0) / np.sqrt(fan_in))

    OH = (H + 2 * pad - KH) // stride + 1
    OW = (W + 2 * pad - KW) // stride + 1
    Hp, Wp = H + 2 * pad, W + 2 * pad
    K = KH * KW * Cin
    M = OH * OW

    # ---- wrapper glue (weight-sized / one pass over the activation) --------
    # NCHW -> NHWC once.  (In a full model you would keep NHWC end-to-end.)
    x = jnp.transpose(x_nchw, (0, 2, 3, 1))                   # (N, H, W, Cin)
    if pad:
        x = jnp.pad(x, ((0, 0), (pad, pad), (pad, pad), (0, 0)))
    x = x.astype(jnp.bfloat16)                                # halve HBM read bytes

    # weight (Cout, Cin, KH, KW) -> (KH, KW, Cin, Cout) -> (K, Cout), with the
    # equalized-LR scale folded in, cast to bf16 for the MXU.
    w2 = (jnp.transpose(weight_oihw, (2, 3, 1, 0)).reshape(K, Cout)
          * scale).astype(jnp.bfloat16)

    kernel = functools.partial(_eq_conv2d_kernel, KH=KH, KW=KW, stride=stride,
                               OH=OH, OW=OW, use_bias=use_bias)

    in_specs = [
        # one padded image per grid step; last two block dims equal full dims
        pl.BlockSpec((1, Hp, Wp, Cin), lambda n: (n, 0, 0, 0)),
        # grid-invariant weight (tiny: K x Cout)
        pl.BlockSpec((K, Cout), lambda n: (0, 0)),
    ]
    args = [x, w2]
    if use_bias:
        in_specs.append(pl.BlockSpec((1, Cout), lambda n: (0, 0)))
        args.append(bias.reshape(1, Cout).astype(jnp.float32))

    out = pl.pallas_call(
        kernel,
        out_shape=jax.ShapeDtypeStruct((N, Cout, M), jnp.float32),
        grid_spec=pltpu.PrefetchScalarGridSpec(
            num_scalar_prefetch=0,
            grid=(N,),
            in_specs=in_specs,
            out_specs=pl.BlockSpec((1, Cout, M), lambda n: (n, 0, 0)),
        ),
        compiler_params=pltpu.CompilerParams(
            dimension_semantics=("parallel",)),
    )(*args)

    # (N, Cout, OH*OW) -> (N, Cout, OH, OW): metadata-only reshape, no transpose.
    return out.reshape(N, Cout, OH, OW)


if __name__ == "__main__":
    # module config: c_in=4, c_out=8, k_size=3, stride=1, pad=1, bias=True
    N, Cin, H, W = 2, 4, 16, 16
    Cout, KH, KW = 8, 3, 3
    stride, pad = 1, 1

    key = jax.random.PRNGKey(0)
    kx, kw_, kb = jax.random.split(key, 3)
    x = jax.random.normal(kx, (N, Cin, H, W), dtype=jnp.float32)
    weight = jax.random.normal(kw_, (Cout, Cin, KH, KW), dtype=jnp.float32)
    bias = 0.1 * jax.random.normal(kb, (Cout,), dtype=jnp.float32)

    y = equalized_conv2d(x, weight, bias, stride=stride, pad=pad, use_bias=True)
    y = jax.block_until_ready(y)

    # reference: F.conv2d(x, weight*scale, bias, stride, pad) semantics (f32)
    scale = float(np.sqrt(2.0) / np.sqrt(KH * KW * Cin))
    y_ref = jax.lax.conv_general_dilated(
        x, weight * scale,
        window_strides=(stride, stride),
        padding=[(pad, pad), (pad, pad)],
        dimension_numbers=("NCHW", "OIHW", "NCHW"),
    ) + bias[None, :, None, None]

    assert y.shape == (N, Cout, H, W), y.shape
    # bf16 MXU inputs => loosened tolerance vs. the f32 reference.
    np.testing.assert_allclose(np.asarray(y), np.asarray(y_ref),
                               rtol=5e-2, atol=5e-2)
    print("KERNEL_OK")
</pallas_src>

<mosaic_0001>
module attributes {stable_mosaic.version = 11 : i64} {
  func.func @_eq_conv2d_kernel(%arg0: i32, %arg1: memref<1x18x18x4xbf16, #tpu.memory_space<vmem>>, %arg2: memref<36x8xbf16, #tpu.memory_space<vmem>>, %arg3: memref<1x8xf32, #tpu.memory_space<vmem>>, %arg4: memref<1x8x256xf32, #tpu.memory_space<vmem>>) attributes {dimension_semantics = [#tpu.dimension_semantics<parallel>], iteration_bounds = array<i64: 2>, scalar_prefetch = 0 : i64, scratch_operands = 0 : i64, tpu.core_type = #tpu.core_type<tc>, window_params = [{transform_indices = @transform_0, window_bounds = array<i64: 1, 18, 18, 4>}, {pipeline_mode = #tpu.pipeline_mode<synchronous>, transform_indices = @transform_1, window_bounds = array<i64: 36, 8>}, {pipeline_mode = #tpu.pipeline_mode<synchronous>, transform_indices = @transform_2, window_bounds = array<i64: 1, 8>}, {transform_indices = @transform_3, window_bounds = array<i64: 1, 8, 256>}]} {
    %c0 = arith.constant 0 : index
    %c0_0 = arith.constant 0 : index
    %c0_1 = arith.constant 0 : index
    %c0_2 = arith.constant 0 : index
    %0 = vector.load %arg1[%c0, %c0_0, %c0_1, %c0_2] : memref<1x18x18x4xbf16, #tpu.memory_space<vmem>>, vector<1x18x18x4xbf16>
    %1 = vector.shape_cast %0 : vector<1x18x18x4xbf16> to vector<18x18x4xbf16>
    %2 = arith.extf %1 : vector<18x18x4xbf16> to vector<18x18x4xf32>
    %3 = vector.extract_strided_slice %2 {offsets = [0, 0, 0], sizes = [16, 16, 4], strides = [1, 1, 1]} : vector<18x18x4xf32> to vector<16x16x4xf32>
    %4 = vector.shape_cast %3 : vector<16x16x4xf32> to vector<256x4xf32>
    %5 = vector.extract_strided_slice %2 {offsets = [0, 1, 0], sizes = [16, 16, 4], strides = [1, 1, 1]} : vector<18x18x4xf32> to vector<16x16x4xf32>
    %6 = vector.shape_cast %5 : vector<16x16x4xf32> to vector<256x4xf32>
    %7 = vector.extract_strided_slice %2 {offsets = [0, 2, 0], sizes = [16, 16, 4], strides = [1, 1, 1]} : vector<18x18x4xf32> to vector<16x16x4xf32>
    %8 = vector.shape_cast %7 : vector<16x16x4xf32> to vector<256x4xf32>
    %9 = vector.extract_strided_slice %2 {offsets = [1, 0, 0], sizes = [16, 16, 4], strides = [1, 1, 1]} : vector<18x18x4xf32> to vector<16x16x4xf32>
    %10 = vector.shape_cast %9 : vector<16x16x4xf32> to vector<256x4xf32>
    %11 = vector.extract_strided_slice %2 {offsets = [1, 1, 0], sizes = [16, 16, 4], strides = [1, 1, 1]} : vector<18x18x4xf32> to vector<16x16x4xf32>
    %12 = vector.shape_cast %11 : vector<16x16x4xf32> to vector<256x4xf32>
    %13 = vector.extract_strided_slice %2 {offsets = [1, 2, 0], sizes = [16, 16, 4], strides = [1, 1, 1]} : vector<18x18x4xf32> to vector<16x16x4xf32>
    %14 = vector.shape_cast %13 : vector<16x16x4xf32> to vector<256x4xf32>
    %15 = vector.extract_strided_slice %2 {offsets = [2, 0, 0], sizes = [16, 16, 4], strides = [1, 1, 1]} : vector<18x18x4xf32> to vector<16x16x4xf32>
    %16 = vector.shape_cast %15 : vector<16x16x4xf32> to vector<256x4xf32>
    %17 = vector.extract_strided_slice %2 {offsets = [2, 1, 0], sizes = [16, 16, 4], strides = [1, 1, 1]} : vector<18x18x4xf32> to vector<16x16x4xf32>
    %18 = vector.shape_cast %17 : vector<16x16x4xf32> to vector<256x4xf32>
    %19 = vector.extract_strided_slice %2 {offsets = [2, 2, 0], sizes = [16, 16, 4], strides = [1, 1, 1]} : vector<18x18x4xf32> to vector<16x16x4xf32>
    %20 = vector.shape_cast %19 : vector<16x16x4xf32> to vector<256x4xf32>
    %21 = tpu.concatenate %4, %6, %8, %10, %12, %14, %16, %18, %20 in 1 : vector<256x4xf32>, vector<256x4xf32>, vector<256x4xf32>, vector<256x4xf32>, vector<256x4xf32>, vector<256x4xf32>, vector<256x4xf32>, vector<256x4xf32>, vector<256x4xf32> -> vector<256x36xf32>
    %22 = arith.truncf %21 : vector<256x36xf32> to vector<256x36xbf16>
    %c0_3 = arith.constant 0 : index
    %c0_4 = arith.constant 0 : index
    %23 = vector.load %arg2[%c0_3, %c0_4] : memref<36x8xbf16, #tpu.memory_space<vmem>>, vector<36x8xbf16>
    %cst = arith.constant dense<0.000000e+00> : vector<256x8xf32>
    %24 = tpu.matmul %22, %23, %cst {dimension_numbers = #tpu.dot_dimension_numbers<[1], [0], [0], [1], [0, 0, 1, 1], [], []>} : vector<256x36xbf16>, vector<36x8xbf16>, vector<256x8xf32> -> vector<256x8xf32>
    %c0_5 = arith.constant 0 : index
    %c0_6 = arith.constant 0 : index
    %25 = vector.load %arg3[%c0_5, %c0_6] : memref<1x8xf32, #tpu.memory_space<vmem>>, vector<1x8xf32>
    %26 = vector.broadcast %25 : vector<1x8xf32> to vector<256x8xf32>
    %27 = arith.addf %24, %26 : vector<256x8xf32>
    %28 = tpu.transpose %27, [1, 0] : vector<256x8xf32> -> vector<8x256xf32>
    %c0_7 = arith.constant 0 : index
    %c0_8 = arith.constant 0 : index
    %c0_9 = arith.constant 0 : index
    %29 = vector.load %arg4[%c0_7, %c0_8, %c0_9] : memref<1x8x256xf32, #tpu.memory_space<vmem>>, vector<1x8x256xf32>
    %30 = vector.shape_cast %29 : vector<1x8x256xf32> to vector<8x256xf32>
    %31 = vector.shape_cast %28 : vector<8x256xf32> to vector<1x8x256xf32>
    tpu.vector_store %arg4[%c0_7, %c0_8, %c0_9], %31 {strides = array<i32>} : memref<1x8x256xf32, #tpu.memory_space<vmem>>, vector<1x8x256xf32>,
    return
  }
  func.func @transform_0(%arg0: i32) -> (i32, i32, i32, i32) {
    %c0_i32 = arith.constant 0 : i32
    %c0_i32_0 = arith.constant 0 : i32
    %c0_i32_1 = arith.constant 0 : i32
    %c0_i32_2 = arith.constant 0 : i32
    return %arg0, %c0_i32, %c0_i32_0, %c0_i32_1 : i32, i32, i32, i32
  }
  func.func @transform_1(%arg0: i32) -> (i32, i32) {
    %c0_i32 = arith.constant 0 : i32
    %c0_i32_0 = arith.constant 0 : i32
    %c0_i32_1 = arith.constant 0 : i32
    return %c0_i32, %c0_i32_0 : i32, i32
  }
  func.func @transform_2(%arg0: i32) -> (i32, i32) {
    %c0_i32 = arith.constant 0 : i32
    %c0_i32_0 = arith.constant 0 : i32
    %c0_i32_1 = arith.constant 0 : i32
    return %c0_i32, %c0_i32_0 : i32, i32
  }
  func.func @transform_3(%arg0: i32) -> (i32, i32, i32) {
    %c0_i32 = arith.constant 0 : i32
    %c0_i32_0 = arith.constant 0 : i32
    %c0_i32_1 = arith.constant 0 : i32
    return %arg0, %c0_i32, %c0_i32_0 : i32, i32, i32
  }
}

</mosaic_0001>

<llo_original>
// kernel: tpu_custom_call.1
$region0: #{tpu_custom_call.1}
  #allocation0 [shape = 'u32[]', space=smem, size = 0x4, offset = 0x4, fixed_abs, tag = 'smem constant byte address 0x4 - core index']
  #allocation1 [shape = 'u32[72,128]{1,0:T(1,128)}', space=vmem, size = 0x9000, scoped, tag = 'internal scratch']
  %s0 = inlined_call_operand.vmem [shape: bf16[2,18,18,4], index: 0, kind: input, shape index: {}]
  %s1 = inlined_call_operand.vmem [shape: bf16[36,8], index: 1, kind: input, shape index: {}]
  %s2 = inlined_call_operand.vmem [shape: f32[1,8], index: 2, kind: input, shape index: {}]
  %s3 = inlined_call_operand.hbm [shape: f32[2,8,256], index: 3, kind: output, shape index: {}]
  %s4 = sld [smem:[#allocation0]]
  $region45: #{tpu_custom_call.1} parent=0
    _
  %s6 = ssub.s32 1, %s4
  %s7 = scalar_select 0, %s6, %s4
  $region1: #{tpu_custom_call.1} parent=0
    #allocation2 [shape = 'u8[16384]{0}', space=vmem, size = 0x4000, scoped, tag = 'output window, operand 0']
    #allocation3 [shape = 's32[2]{0}', space=sflag, size = 0x8, scoped, tag = 'scoped memory for tpu_custom_call.1']
    %8 = vsyncpa [#allocation3], 0
    %s9 = scalar_lea.sflag [#allocation3], 1
    %10 = vsyncpa %s9, 0
    loop: start=0, step=1, limit=4
    $region2: #{tpu_custom_call.1} parent=1 // loop_pre_header
      _
    $region3: #{tpu_custom_call.1} parent=1 // loop_header
      %s12 = sphi 0, %s16
      %p13 = scmp.ge.s32.totalorder %s12, 4
      %s22 = sphi 0, %s24
      %s25 = sphi 0, %s22
      %s26 = sphi 0, %s25
      %s42 = sphi 0, %s26
      %s46 = sphi 0, %s46
      %s48 = sphi 0, %s46
      %s49 = sphi 0, %s48
      %s63 = sphi 0, %s49
      %s67 = sphi 0, %s67
      %s69 = sphi 0, %s67
      %s70 = sphi 0, %s69
      %s84 = sphi 0, %s70
      %s90 = sphi 0, %s92
      %s93 = sphi 0, %s90
      %s94 = sphi 0, %s93
      %s110 = sphi 0, %s94
    $region4: #{tpu_custom_call.1} parent=1 // loop_header_branch
      %15 = sbr.rel (%p13) target = $region8
    $region5: #{tpu_custom_call.1} parent=1 // loop_body
      %s17 = ssub.s32 %s12, 1
      %s18 = ssub.s32 %s12, 2
      %s19 = sadd.s32 %s12, 1
      %s20 = ssub.s32 %s12, %s19
      %p21 = scmp.eq.s32.totalorder %s20, 0
      %s23 = sadd.s32 %s22, 1
      %s24 = scalar_select %p21, %s22, %s23
      %p27 = pneg %p21
      %p28 = scmp.eq.s32.totalorder %s12, 1
      %p29 = por %p27, %p28
      %p30 = scmp.ne.s32.totalorder %s22, %s25
      %p31 = scmp.eq.s32.totalorder %s12, 0
      %p32 = por %p30, %p31
      %p33 = scmp.ne.s32.totalorder %s22, %s25
      %p34 = scmp.eq.s32.totalorder %s17, 1
      %p35 = por %p33, %p34
      %p36 = scmp.ne.s32.totalorder %s25, %s26
      %p37 = scmp.eq.s32.totalorder %s17, 0
      %p38 = por %p36, %p37
      %p39 = scmp.ne.s32.totalorder %s25, %s26
      %p40 = scmp.eq.s32.totalorder %s18, 1
      %p41 = por %p39, %p40
      %p43 = scmp.ne.s32.totalorder %s26, %s42
      %p44 = scmp.eq.s32.totalorder %s18, 0
      %p45 = por %p43, %p44
      %s47 = sadd.s32 %s46, 1
      %p50 = scmp.eq.s32.totalorder %s12, 1
      %p51 = scmp.ne.s32.totalorder %s46, %s48
      %p52 = scmp.eq.s32.totalorder %s12, 0
      %p53 = por %p51, %p52
      %p54 = scmp.ne.s32.totalorder %s46, %s48
      %p55 = scmp.eq.s32.totalorder %s17, 1
      %p56 = por %p54, %p55
      %p57 = scmp.ne.s32.totalorder %s48, %s49
      %p58 = scmp.eq.s32.totalorder %s17, 0
      %p59 = por %p57, %p58
      %p60 = scmp.ne.s32.totalorder %s48, %s49
      %p61 = scmp.eq.s32.totalorder %s18, 1
      %p62 = por %p60, %p61
      %p64 = scmp.ne.s32.totalorder %s49, %s63
      %p65 = scmp.eq.s32.totalorder %s18, 0
      %p66 = por %p64, %p65
      %s68 = sadd.s32 %s67, 1
      %p71 = scmp.eq.s32.totalorder %s12, 1
      %p72 = scmp.ne.s32.totalorder %s67, %s69
      %p73 = scmp.eq.s32.totalorder %s12, 0
      %p74 = por %p72, %p73
      %p75 = scmp.ne.s32.totalorder %s67, %s69
      %p76 = scmp.eq.s32.totalorder %s17, 1
      %p77 = por %p75, %p76
      %p78 = scmp.ne.s32.totalorder %s69, %s70
      %p79 = scmp.eq.s32.totalorder %s17, 0
      %p80 = por %p78, %p79
      %p81 = scmp.ne.s32.totalorder %s69, %s70
      %p82 = scmp.eq.s32.totalorder %s18, 1
      %p83 = por %p81, %p82
      %p85 = scmp.ne.s32.totalorder %s70, %s84
      %p86 = scmp.eq.s32.totalorder %s18, 0
      %p87 = por %p85, %p86
      %s88 = ssub.s32 %s12, %s19
      %p89 = scmp.eq.s32.totalorder %s88, 0
      %s91 = sadd.s32 %s90, 1
      %s92 = scalar_select %p89, %s90, %s91
      %p95 = pneg %p89
      %p96 = scmp.eq.s32.totalorder %s12, 1
      %p97 = por %p95, %p96
      %p98 = scmp.ne.s32.totalorder %s90, %s93
      %p99 = scmp.eq.s32.totalorder %s12, 0
      %p100 = por %p98, %p99
      %p101 = scmp.ne.s32.totalorder %s90, %s93
      %p102 = scmp.eq.s32.totalorder %s17, 1
      %p103 = por %p101, %p102
      %p104 = scmp.ne.s32.totalorder %s93, %s94
      %p105 = scmp.eq.s32.totalorder %s17, 0
      %p106 = por %p104, %p105
      %p107 = scmp.ne.s32.totalorder %s93, %s94
      %p108 = scmp.eq.s32.totalorder %s18, 1
      %p109 = por %p107, %p108
      %p111 = scmp.ne.s32.totalorder %s94, %s110
      %p112 = scmp.eq.s32.totalorder %s18, 0
      %p113 = por %p111, %p112
      %p114 = scmp.le.s32.totalorder 1, %s12
      %p115 = scmp.lt.s32.totalorder %s12, 3
      %p116 = pnand %p114, %p115
      %p117 = pneg %p116
      // Predicated region
      $region9: #{tpu_custom_call.1} parent=5 // pred_check
        _
      $region10: #{tpu_custom_call.1} parent=5 // pred_check_branch
        %119 = sbr.rel (%p116) target = $region12
      $region11: #{tpu_custom_call.1} parent=5 // pred_region
        %s120 = ssub.s32 %s12, 1
        // Predicated region
        $region13: #{tpu_custom_call.1} parent=11 // pred_check
          %p121 = pneg %p59
        $region14: #{tpu_custom_call.1} parent=11 // pred_check_branch
          %123 = sbr.rel (%p121) target = $region16
        $region15: #{tpu_custom_call.1} parent=11 // pred_region
          _
        $region16: #{tpu_custom_call.1} parent=11 // pred_fallthru
          _
        // Predicated region
        $region17: #{tpu_custom_call.1} parent=11 // pred_check
          %p124 = pneg %p80
        $region18: #{tpu_custom_call.1} parent=11 // pred_check_branch
          %126 = sbr.rel (%p124) target = $region20
        $region19: #{tpu_custom_call.1} parent=11 // pred_region
          _
        $region20: #{tpu_custom_call.1} parent=11 // pred_fallthru
          _
      $region12: #{tpu_custom_call.1} parent=5 // pred_fallthru
        _
      %p127 = scmp.lt.s32.totalorder %s12, 2
      // Predicated region
      $region21: #{tpu_custom_call.1} parent=5 // pred_check
        %p128 = pneg %p127
      $region22: #{tpu_custom_call.1} parent=5 // pred_check_branch
        %130 = sbr.rel (%p128) target = $region24
      $region23: #{tpu_custom_call.1} parent=5 // pred_region
        // Predicated region
        $region25: #{tpu_custom_call.1} parent=23 // pred_check
          %p131 = pneg %p32
        $region26: #{tpu_custom_call.1} parent=23 // pred_check_branch
          %133 = sbr.rel (%p131) target = $region28
        $region27: #{tpu_custom_call.1} parent=23 // pred_region
          %p134 = scmp.lt.s32.totalorder %s12, 1
          %s135 = scalar_select %p134, %s12, 1
          %s136 = smul.addr %s135, 54
          %s137 = smul.addr %s136, 4
          %s138 = scalar_lea.vmem %s0, %s137
        $region28: #{tpu_custom_call.1} parent=23 // pred_fallthru
          _
      $region24: #{tpu_custom_call.1} parent=5 // pred_fallthru
        _
      %p139 = scmp.le.s32.totalorder 1, %s12
      %p140 = scmp.lt.s32.totalorder %s12, 3
      %p141 = pnand %p139, %p140
      %p142 = pneg %p141
      // Predicated region
      $region29: #{tpu_custom_call.1} parent=5 // pred_check
        _
      $region30: #{tpu_custom_call.1} parent=5 // pred_check_branch
        %144 = sbr.rel (%p141) target = $region32
      $region31: #{tpu_custom_call.1} parent=5 // pred_region
        %s145 = ssub.s32 %s12, 1
        %p146 = scmp.lt.s32.totalorder %s17, 1
        %s147 = scalar_select %p146, %s17, 1
        %s148 = smul.addr %s147, 54
        %s149 = smul.addr %s148, 4
        %s150 = scalar_lea.vmem %s0, %s149
        %p151 = pneg %p38
        %p152 = pneg %p35
        %p153 = pneg %p59
        %p154 = pneg %p56
        %p155 = pneg %p80
        %p156 = pneg %p77
        %p157 = pneg %p106
        %p158 = pneg %p103
        %s159 = sand.u32 %s93, 1
        %s160 = scalar_lea.sflag [#allocation3], %s159
        %s161 = sand.u32 %s93, 1
        %s162 = smul.addr %s161, 16
        %s163 = scalar_lea.vmem [#allocation2], %s162
        %p164 = scmp.lt.s32.totalorder %s17, 1
        %s165 = scalar_select %p164, %s17, 1
        %s166 = smul.addr %s165, 54
        %s167 = smul.addr %s166, 4
        %s168 = scalar_lea.vmem %s0, %s167
        %v170 = vld [vmem:[%s168] sm:$0xf]
        %v171 = vld [vmem:[%s168 + $0x4] sm:$0xf]
        %v172 = vld [vmem:[%s168 + $0x8] sm:$0x1]
        %v173 = vld [vmem:[%s168 + $0xc] sm:$0xf]
        %v174 = vld [vmem:[%s168 + $0x10] sm:$0xf]
        %v175 = vld [vmem:[%s168 + $0x14] sm:$0x1]
        %v176 = vld [vmem:[%s168 + $0x18] sm:$0xf]
        %v177 = vld [vmem:[%s168 + $0x1c] sm:$0xf]
        %v178 = vld [vmem:[%s168 + $0x20] sm:$0x1]
        %v179 = vld [vmem:[%s168 + $0x24] sm:$0xf]
        %v180 = vld [vmem:[%s168 + $0x28] sm:$0xf]
        %v181 = vld [vmem:[%s168 + $0x2c] sm:$0x1]
        %v182 = vld [vmem:[%s168 + $0x30] sm:$0xf]
        %v183 = vld [vmem:[%s168 + $0x34] sm:$0xf]
        %v184 = vld [vmem:[%s168 + $0x38] sm:$0x1]
        %v185 = vld [vmem:[%s168 + $0x3c] sm:$0xf]
        %v186 = vld [vmem:[%s168 + $0x40] sm:$0xf]
        %v187 = vld [vmem:[%s168 + $0x44] sm:$0x1]
        %v188 = vld [vmem:[%s168 + $0x48] sm:$0xf]
        %v189 = vld [vmem:[%s168 + $0x4c] sm:$0xf]
        %v190 = vld [vmem:[%s168 + $0x50] sm:$0x1]
        %v191 = vld [vmem:[%s168 + $0x54] sm:$0xf]
        %v192 = vld [vmem:[%s168 + $0x58] sm:$0xf]
        %v193 = vld [vmem:[%s168 + $0x5c] sm:$0x1]
        %v194 = vld [vmem:[%s168 + $0x60] sm:$0xf]
        %v195 = vld [vmem:[%s168 + $0x64] sm:$0xf]
        %v196 = vld [vmem:[%s168 + $0x68] sm:$0x1]
        %v197 = vld [vmem:[%s168 + $0x6c] sm:$0xf]
        %v198 = vld [vmem:[%s168 + $0x70] sm:$0xf]
        %v199 = vld [vmem:[%s168 + $0x74] sm:$0x1]
        %v200 = vld [vmem:[%s168 + $0x78] sm:$0xf]
        %v201 = vld [vmem:[%s168 + $0x7c] sm:$0xf]
        %v202 = vld [vmem:[%s168 + $0x80] sm:$0x1]
        %v203 = vld [vmem:[%s168 + $0x84] sm:$0xf]
        %v204 = vld [vmem:[%s168 + $0x88] sm:$0xf]
        %v205 = vld [vmem:[%s168 + $0x8c] sm:$0x1]
        %v206 = vld [vmem:[%s168 + $0x90] sm:$0xf]
        %v207 = vld [vmem:[%s168 + $0x94] sm:$0xf]
        %v208 = vld [vmem:[%s168 + $0x98] sm:$0x1]
        %v209 = vld [vmem:[%s168 + $0x9c] sm:$0xf]
        %v210 = vld [vmem:[%s168 + $0xa0] sm:$0xf]
        %v211 = vld [vmem:[%s168 + $0xa4] sm:$0x1]
        %v212 = vld [vmem:[%s168 + $0xa8] sm:$0xf]
        %v213 = vld [vmem:[%s168 + $0xac] sm:$0xf]
        %v214 = vld [vmem:[%s168 + $0xb0] sm:$0x1]
        %v215 = vld [vmem:[%s168 + $0xb4] sm:$0xf]
        %v216 = vld [vmem:[%s168 + $0xb8] sm:$0xf]
        %v217 = vld [vmem:[%s168 + $0xbc] sm:$0x1]
        %v218 = vld [vmem:[%s168 + $0xc0] sm:$0xf]
        %v219 = vld [vmem:[%s168 + $0xc4] sm:$0xf]
        %v220 = vld [vmem:[%s168 + $0xc8] sm:$0x1]
        %v221 = vld [vmem:[%s168 + $0xcc] sm:$0xf]
        %v222 = vld [vmem:[%s168 + $0xd0] sm:$0xf]
        %v223 = vld [vmem:[%s168 + $0xd4] sm:$0x1]
        %v224 = vunpack.c.l.bf16 %v170
        %v225 = vunpack.c.l.bf16 %v171
        %v226 = vunpack.c.l.bf16 %v172
        %v227 = vunpack.c.l.bf16 %v173
        %v228 = vunpack.c.l.bf16 %v174
        %v229 = vunpack.c.l.bf16 %v175
        %v230 = vunpack.c.l.bf16 %v176
        %v231 = vunpack.c.l.bf16 %v177
        %v232 = vunpack.c.l.bf16 %v178
        %v233 = vunpack.c.l.bf16 %v179
        %v234 = vunpack.c.l.bf16 %v180
        %v235 = vunpack.c.l.bf16 %v181
        %v236 = vunpack.c.l.bf16 %v182
        %v237 = vunpack.c.l.bf16 %v183
        %v238 = vunpack.c.l.bf16 %v184
        %v239 = vunpack.c.l.bf16 %v185
        %v240 = vunpack.c.l.bf16 %v186
        %v241 = vunpack.c.l.bf16 %v187
        %v242 = vunpack.c.l.bf16 %v188
        %v243 = vunpack.c.l.bf16 %v189
        %v244 = vunpack.c.l.bf16 %v190
        %v245 = vunpack.c.l.bf16 %v191
        %v246 = vunpack.c.l.bf16 %v192
        %v247 = vunpack.c.l.bf16 %v193
        %v248 = vunpack.c.l.bf16 %v194
        %v249 = vunpack.c.l.bf16 %v195
        %v250 = vunpack.c.l.bf16 %v196
        %v251 = vunpack.c.l.bf16 %v197
        %v252 = vunpack.c.l.bf16 %v198
        %v253 = vunpack.c.l.bf16 %v199
        %v254 = vunpack.c.l.bf16 %v200
        %v255 = vunpack.c.l.bf16 %v201
        %v256 = vunpack.c.l.bf16 %v202
        %v257 = vunpack.c.l.bf16 %v203
        %v258 = vunpack.c.l.bf16 %v204
        %v259 = vunpack.c.l.bf16 %v205
        %v260 = vunpack.c.l.bf16 %v206
        %v261 = vunpack.c.l.bf16 %v207
        %v262 = vunpack.c.l.bf16 %v208
        %v263 = vunpack.c.l.bf16 %v209
        %v264 = vunpack.c.l.bf16 %v210
        %v265 = vunpack.c.l.bf16 %v211
        %v266 = vunpack.c.l.bf16 %v212
        %v267 = vunpack.c.l.bf16 %v213
        %v268 = vunpack.c.l.bf16 %v214
        %v269 = vunpack.c.l.bf16 %v215
        %v270 = vunpack.c.l.bf16 %v216
        %v271 = vunpack.c.l.bf16 %v217
        %v272 = vunpack.c.l.bf16 %v218
        %v273 = vunpack.c.l.bf16 %v219
        %v274 = vunpack.c.l.bf16 %v220
        %v275 = vunpack.c.l.bf16 %v221
        %v276 = vunpack.c.l.bf16 %v222
        %v277 = vunpack.c.l.bf16 %v223
        %vm326 = vcmask 1046528
        %v327 = vrot.slane %v224, 1
        %v328 = vrot.slane %v225, 1
        %v329 = vsel %vm326, %v327, %v328
        %v330 = vrot.slane %v226, 1
        %v331 = vsel %vm326, %v328, %v330
        %v332 = vrot.slane %v227, 1
        %v333 = vrot.slane %v228, 1
        %v334 = vsel %vm326, %v332, %v333
        %v335 = vrot.slane %v229, 1
        %v336 = vsel %vm326, %v333, %v335
        %v337 = vrot.slane %v230, 1
        %v338 = vrot.slane %v231, 1
        %v339 = vsel %vm326, %v337, %v338
        %v340 = vrot.slane %v232, 1
        %v341 = vsel %vm326, %v338, %v340
        %v342 = vrot.slane %v233, 1
        %v343 = vrot.slane %v234, 1
        %v344 = vsel %vm326, %v342, %v343
        %v345 = vrot.slane %v235, 1
        %v346 = vsel %vm326, %v343, %v345
        %v347 = vrot.slane %v236, 1
        %v348 = vrot.slane %v237, 1
        %v349 = vsel %vm326, %v347, %v348
        %v350 = vrot.slane %v238, 1
        %v351 = vsel %vm326, %v348, %v350
        %v352 = vrot.slane %v239, 1
        %v353 = vrot.slane %v240, 1
        %v354 = vsel %vm326, %v352, %v353
        %v355 = vrot.slane %v241, 1
        %v356 = vsel %vm326, %v353, %v355
        %v357 = vrot.slane %v242, 1
        %v358 = vrot.slane %v243, 1
        %v359 = vsel %vm326, %v357, %v358
        %v360 = vrot.slane %v244, 1
        %v361 = vsel %vm326, %v358, %v360
        %v362 = vrot.slane %v245, 1
        %v363 = vrot.slane %v246, 1
        %v364 = vsel %vm326, %v362, %v363
        %v365 = vrot.slane %v247, 1
        %v366 = vsel %vm326, %v363, %v365
        %v367 = vrot.slane %v248, 1
        %v368 = vrot.slane %v249, 1
        %v369 = vsel %vm326, %v367, %v368
        %v370 = vrot.slane %v250, 1
        %v371 = vsel %vm326, %v368, %v370
        %v372 = vrot.slane %v251, 1
        %v373 = vrot.slane %v252, 1
        %v374 = vsel %vm326, %v372, %v373
        %v375 = vrot.slane %v253, 1
        %v376 = vsel %vm326, %v373, %v375
        %v377 = vrot.slane %v254, 1
        %v378 = vrot.slane %v255, 1
        %v379 = vsel %vm326, %v377, %v378
        %v380 = vrot.slane %v256, 1
        %v381 = vsel %vm326, %v378, %v380
        %v382 = vrot.slane %v257, 1
        %v383 = vrot.slane %v258, 1
        %v384 = vsel %vm326, %v382, %v383
        %v385 = vrot.slane %v259, 1
        %v386 = vsel %vm326, %v383, %v385
        %v387 = vrot.slane %v260, 1
        %v388 = vrot.slane %v261, 1
        %v389 = vsel %vm326, %v387, %v388
        %v390 = vrot.slane %v262, 1
        %v391 = vsel %vm326, %v388, %v390
        %v392 = vrot.slane %v263, 1
        %v393 = vrot.slane %v264, 1
        %v394 = vsel %vm326, %v392, %v393
        %v395 = vrot.slane %v265, 1
        %v396 = vsel %vm326, %v393, %v395
        %v397 = vrot.slane %v266, 1
        %v398 = vrot.slane %v267, 1
        %v399 = vsel %vm326, %v397, %v398
        %v400 = vrot.slane %v268, 1
        %v401 = vsel %vm326, %v398, %v400
        %v402 = vrot.slane %v269, 1
        %v403 = vrot.slane %v270, 1
        %v404 = vsel %vm326, %v402, %v403
        %v405 = vrot.slane %v271, 1
        %v406 = vsel %vm326, %v403, %v405
        %vm407 = vcmask 1045504
        %v408 = vrot.slane %v224, 2
        %v409 = vrot.slane %v225, 2
        %v410 = vsel %vm407, %v408, %v409
        %v411 = vrot.slane %v226, 2
        %v412 = vsel %vm407, %v409, %v411
        %v413 = vrot.slane %v227, 2
        %v414 = vrot.slane %v228, 2
        %v415 = vsel %vm407, %v413, %v414
        %v416 = vrot.slane %v229, 2
        %v417 = vsel %vm407, %v414, %v416
        %v418 = vrot.slane %v230, 2
        %v419 = vrot.slane %v231, 2
        %v420 = vsel %vm407, %v418, %v419
        %v421 = vrot.slane %v232, 2
        %v422 = vsel %vm407, %v419, %v421
        %v423 = vrot.slane %v233, 2
        %v424 = vrot.slane %v234, 2
        %v425 = vsel %vm407, %v423, %v424
        %v426 = vrot.slane %v235, 2
        %v427 = vsel %vm407, %v424, %v426
        %v428 = vrot.slane %v236, 2
        %v429 = vrot.slane %v237, 2
        %v430 = vsel %vm407, %v428, %v429
        %v431 = vrot.slane %v238, 2
        %v432 = vsel %vm407, %v429, %v431
        %v433 = vrot.slane %v239, 2
        %v434 = vrot.slane %v240, 2
        %v435 = vsel %vm407, %v433, %v434
        %v436 = vrot.slane %v241, 2
        %v437 = vsel %vm407, %v434, %v436
        %v438 = vrot.slane %v242, 2
        %v439 = vrot.slane %v243, 2
        %v440 = vsel %vm407, %v438, %v439
        %v441 = vrot.slane %v244, 2
        %v442 = vsel %vm407, %v439, %v441
        %v443 = vrot.slane %v245, 2
        %v444 = vrot.slane %v246, 2
        %v445 = vsel %vm407, %v443, %v444
        %v446 = vrot.slane %v247, 2
        %v447 = vsel %vm407, %v444, %v446
        %v448 = vrot.slane %v248, 2
        %v449 = vrot.slane %v249, 2
        %v450 = vsel %vm407, %v448, %v449
        %v451 = vrot.slane %v250, 2
        %v452 = vsel %vm407, %v449, %v451
        %v453 = vrot.slane %v251, 2
        %v454 = vrot.slane %v252, 2
        %v455 = vsel %vm407, %v453, %v454
        %v456 = vrot.slane %v253, 2
        %v457 = vsel %vm407, %v454, %v456
        %v458 = vrot.slane %v254, 2
        %v459 = vrot.slane %v255, 2
        %v460 = vsel %vm407, %v458, %v459
        %v461 = vrot.slane %v256, 2
        %v462 = vsel %vm407, %v459, %v461
        %v463 = vrot.slane %v257, 2
        %v464 = vrot.slane %v258, 2
        %v465 = vsel %vm407, %v463, %v464
        %v466 = vrot.slane %v259, 2
        %v467 = vsel %vm407, %v464, %v466
        %v468 = vrot.slane %v260, 2
        %v469 = vrot.slane %v261, 2
        %v470 = vsel %vm407, %v468, %v469
        %v471 = vrot.slane %v262, 2
        %v472 = vsel %vm407, %v469, %v471
        %v473 = vrot.slane %v263, 2
        %v474 = vrot.slane %v264, 2
        %v475 = vsel %vm407, %v473, %v474
        %v476 = vrot.slane %v265, 2
        %v477 = vsel %vm407, %v474, %v476
        %v478 = vrot.slane %v266, 2
        %v479 = vrot.slane %v267, 2
        %v480 = vsel %vm407, %v478, %v479
        %v481 = vrot.slane %v268, 2
        %v482 = vsel %vm407, %v479, %v481
        %v483 = vrot.slane %v269, 2
        %v484 = vrot.slane %v270, 2
        %v485 = vsel %vm407, %v483, %v484
        %v486 = vrot.slane %v271, 2
        %v487 = vsel %vm407, %v484, %v486
        %v491 = vrot.slane %v272, 1
        %v492 = vrot.slane %v273, 1
        %v493 = vsel %vm326, %v491, %v492
        %v494 = vrot.slane %v274, 1
        %v495 = vsel %vm326, %v492, %v494
        %v496 = vrot.slane %v272, 2
        %v497 = vrot.slane %v273, 2
        %v498 = vsel %vm407, %v496, %v497
        %v499 = vrot.slane %v274, 2
        %v500 = vsel %vm407, %v497, %v499
        %v504 = vrot.slane %v275, 1
        %v505 = vrot.slane %v276, 1
        %v506 = vsel %vm326, %v504, %v505
        %v507 = vrot.slane %v277, 1
        %v508 = vsel %vm326, %v505, %v507
        %v509 = vrot.slane %v275, 2
        %v510 = vrot.slane %v276, 2
        %v511 = vsel %vm407, %v509, %v510
        %v512 = vrot.slane %v277, 2
        %v513 = vsel %vm407, %v510, %v512
        %514 = vrot.lane.b32.xlu0 %v329, 4
        %v515 = vpop.permute.xlu0 %514
        %516 = vrot.lane.b32.xlu0 %v331, 4
        %v517 = vpop.permute.xlu0 %516
        %518 = vrot.lane.b32.xlu0 %v334, 4
        %v519 = vpop.permute.xlu0 %518
        %520 = vrot.lane.b32.xlu0 %v336, 4
        %v521 = vpop.permute.xlu0 %520
        %522 = vrot.lane.b32.xlu0 %v339, 4
        %v523 = vpop.permute.xlu0 %522
        %524 = vrot.lane.b32.xlu0 %v341, 4
        %v525 = vpop.permute.xlu0 %524
        %526 = vrot.lane.b32.xlu0 %v344, 4
        %v527 = vpop.permute.xlu0 %526
        %528 = vrot.lane.b32.xlu0 %v346, 4
        %v529 = vpop.permute.xlu0 %528
        %530 = vrot.lane.b32.xlu0 %v349, 4
        %v531 = vpop.permute.xlu0 %530
        %532 = vrot.lane.b32.xlu0 %v351, 4
        %v533 = vpop.permute.xlu0 %532
        %534 = vrot.lane.b32.xlu0 %v354, 4
        %v535 = vpop.permute.xlu0 %534
        %536 = vrot.lane.b32.xlu0 %v356, 4
        %v537 = vpop.permute.xlu0 %536
        %538 = vrot.lane.b32.xlu0 %v359, 4
        %v539 = vpop.permute.xlu0 %538
        %540 = vrot.lane.b32.xlu0 %v361, 4
        %v541 = vpop.permute.xlu0 %540
        %542 = vrot.lane.b32.xlu0 %v364, 4
        %v543 = vpop.permute.xlu0 %542
        %544 = vrot.lane.b32.xlu0 %v366, 4
        %v545 = vpop.permute.xlu0 %544
        %546 = vrot.lane.b32.xlu0 %v369, 4
        %v547 = vpop.permute.xlu0 %546
        %548 = vrot.lane.b32.xlu0 %v371, 4
        %v549 = vpop.permute.xlu0 %548
        %550 = vrot.lane.b32.xlu0 %v374, 4
        %v551 = vpop.permute.xlu0 %550
        %552 = vrot.lane.b32.xlu0 %v376, 4
        %v553 = vpop.permute.xlu0 %552
        %554 = vrot.lane.b32.xlu0 %v379, 4
        %v555 = vpop.permute.xlu0 %554
        %556 = vrot.lane.b32.xlu0 %v381, 4
        %v557 = vpop.permute.xlu0 %556
        %558 = vrot.lane.b32.xlu0 %v384, 4
        %v559 = vpop.permute.xlu0 %558
        %560 = vrot.lane.b32.xlu0 %v386, 4
        %v561 = vpop.permute.xlu0 %560
        %562 = vrot.lane.b32.xlu0 %v389, 4
        %v563 = vpop.permute.xlu0 %562
        %564 = vrot.lane.b32.xlu0 %v391, 4
        %v565 = vpop.permute.xlu0 %564
        %566 = vrot.lane.b32.xlu0 %v394, 4
        %v567 = vpop.permute.xlu0 %566
        %568 = vrot.lane.b32.xlu0 %v396, 4
        %v569 = vpop.permute.xlu0 %568
        %570 = vrot.lane.b32.xlu0 %v399, 4
        %v571 = vpop.permute.xlu0 %570
        %572 = vrot.lane.b32.xlu0 %v401, 4
        %v573 = vpop.permute.xlu0 %572
        %574 = vrot.lane.b32.xlu0 %v404, 4
        %v575 = vpop.permute.xlu0 %574
        %576 = vrot.lane.b32.xlu0 %v406, 4
        %v577 = vpop.permute.xlu0 %576
        %610 = vrot.lane.b32.xlu0 %v410, 8
        %v611 = vpop.permute.xlu0 %610
        %612 = vrot.lane.b32.xlu0 %v412, 8
        %v613 = vpop.permute.xlu0 %612
        %614 = vrot.lane.b32.xlu0 %v415, 8
        %v615 = vpop.permute.xlu0 %614
        %616 = vrot.lane.b32.xlu0 %v417, 8
        %v617 = vpop.permute.xlu0 %616
        %618 = vrot.lane.b32.xlu0 %v420, 8
        %v619 = vpop.permute.xlu0 %618
        %620 = vrot.lane.b32.xlu0 %v422, 8
        %v621 = vpop.permute.xlu0 %620
        %622 = vrot.lane.b32.xlu0 %v425, 8
        %v623 = vpop.permute.xlu0 %622
        %624 = vrot.lane.b32.xlu0 %v427, 8
        %v625 = vpop.permute.xlu0 %624
        %626 = vrot.lane.b32.xlu0 %v430, 8
        %v627 = vpop.permute.xlu0 %626
        %628 = vrot.lane.b32.xlu0 %v432, 8
        %v629 = vpop.permute.xlu0 %628
        %630 = vrot.lane.b32.xlu0 %v435, 8
        %v631 = vpop.permute.xlu0 %630
        %632 = vrot.lane.b32.xlu0 %v437, 8
        %v633 = vpop.permute.xlu0 %632
        %634 = vrot.lane.b32.xlu0 %v440, 8
        %v635 = vpop.permute.xlu0 %634
        %636 = vrot.lane.b32.xlu0 %v442, 8
        %v637 = vpop.permute.xlu0 %636
        %638 = vrot.lane.b32.xlu0 %v445, 8
        %v639 = vpop.permute.xlu0 %638
        %640 = vrot.lane.b32.xlu0 %v447, 8
        %v641 = vpop.permute.xlu0 %640
        %642 = vrot.lane.b32.xlu0 %v450, 8
        %v643 = vpop.permute.xlu0 %642
        %644 = vrot.lane.b32.xlu0 %v452, 8
        %v645 = vpop.permute.xlu0 %644
        %646 = vrot.lane.b32.xlu0 %v455, 8
        %v647 = vpop.permute.xlu0 %646
        %648 = vrot.lane.b32.xlu0 %v457, 8
        %v649 = vpop.permute.xlu0 %648
        %650 = vrot.lane.b32.xlu0 %v460, 8
        %v651 = vpop.permute.xlu0 %650
        %652 = vrot.lane.b32.xlu0 %v462, 8
        %v653 = vpop.permute.xlu0 %652
        %654 = vrot.lane.b32.xlu0 %v465, 8
        %v655 = vpop.permute.xlu0 %654
        %656 = vrot.lane.b32.xlu0 %v467, 8
        %v657 = vpop.permute.xlu0 %656
        %658 = vrot.lane.b32.xlu0 %v470, 8
        %v659 = vpop.permute.xlu0 %658
        %660 = vrot.lane.b32.xlu0 %v472, 8
        %v661 = vpop.permute.xlu0 %660
        %662 = vrot.lane.b32.xlu0 %v475, 8
        %v663 = vpop.permute.xlu0 %662
        %664 = vrot.lane.b32.xlu0 %v477, 8
        %v665 = vpop.permute.xlu0 %664
        %666 = vrot.lane.b32.xlu0 %v480, 8
        %v667 = vpop.permute.xlu0 %666
        %668 = vrot.lane.b32.xlu0 %v482, 8
        %v669 = vpop.permute.xlu0 %668
        %670 = vrot.lane.b32.xlu0 %v485, 8
        %v671 = vpop.permute.xlu0 %670
        %672 = vrot.lane.b32.xlu0 %v487, 8
        %v673 = vpop.permute.xlu0 %672
        %706 = vrot.lane.b32.xlu0 %v227, 12
        %v707 = vpop.permute.xlu0 %706
        %708 = vrot.lane.b32.xlu0 %v228, 12
        %v709 = vpop.permute.xlu0 %708
        %710 = vrot.lane.b32.xlu0 %v230, 12
        %v711 = vpop.permute.xlu0 %710
        %712 = vrot.lane.b32.xlu0 %v231, 12
        %v713 = vpop.permute.xlu0 %712
        %714 = vrot.lane.b32.xlu0 %v233, 12
        %v715 = vpop.permute.xlu0 %714
        %716 = vrot.lane.b32.xlu0 %v234, 12
        %v717 = vpop.permute.xlu0 %716
        %718 = vrot.lane.b32.xlu0 %v236, 12
        %v719 = vpop.permute.xlu0 %718
        %720 = vrot.lane.b32.xlu0 %v237, 12
        %v721 = vpop.permute.xlu0 %720
        %722 = vrot.lane.b32.xlu0 %v239, 12
        %v723 = vpop.permute.xlu0 %722
        %724 = vrot.lane.b32.xlu0 %v240, 12
        %v725 = vpop.permute.xlu0 %724
        %726 = vrot.lane.b32.xlu0 %v242, 12
        %v727 = vpop.permute.xlu0 %726
        %728 = vrot.lane.b32.xlu0 %v243, 12
        %v729 = vpop.permute.xlu0 %728
        %730 = vrot.lane.b32.xlu0 %v245, 12
        %v731 = vpop.permute.xlu0 %730
        %732 = vrot.lane.b32.xlu0 %v246, 12
        %v733 = vpop.permute.xlu0 %732
        %734 = vrot.lane.b32.xlu0 %v248, 12
        %v735 = vpop.permute.xlu0 %734
        %736 = vrot.lane.b32.xlu0 %v249, 12
        %v737 = vpop.permute.xlu0 %736
        %738 = vrot.lane.b32.xlu0 %v251, 12
        %v739 = vpop.permute.xlu0 %738
        %740 = vrot.lane.b32.xlu0 %v252, 12
        %v741 = vpop.permute.xlu0 %740
        %742 = vrot.lane.b32.xlu0 %v254, 12
        %v743 = vpop.permute.xlu0 %742
        %744 = vrot.lane.b32.xlu0 %v255, 12
        %v745 = vpop.permute.xlu0 %744
        %746 = vrot.lane.b32.xlu0 %v257, 12
        %v747 = vpop.permute.xlu0 %746
        %748 = vrot.lane.b32.xlu0 %v258, 12
        %v749 = vpop.permute.xlu0 %748
        %750 = vrot.lane.b32.xlu0 %v260, 12
        %v751 = vpop.permute.xlu0 %750
        %752 = vrot.lane.b32.xlu0 %v261, 12
        %v753 = vpop.permute.xlu0 %752
        %754 = vrot.lane.b32.xlu0 %v263, 12
        %v755 = vpop.permute.xlu0 %754
        %756 = vrot.lane.b32.xlu0 %v264, 12
        %v757 = vpop.permute.xlu0 %756
        %758 = vrot.lane.b32.xlu0 %v266, 12
        %v759 = vpop.permute.xlu0 %758
        %760 = vrot.lane.b32.xlu0 %v267, 12
        %v761 = vpop.permute.xlu0 %760
        %762 = vrot.lane.b32.xlu0 %v269, 12
        %v763 = vpop.permute.xlu0 %762
        %764 = vrot.lane.b32.xlu0 %v270, 12
        %v765 = vpop.permute.xlu0 %764
        %766 = vrot.lane.b32.xlu0 %v272, 12
        %v767 = vpop.permute.xlu0 %766
        %768 = vrot.lane.b32.xlu0 %v273, 12
        %v769 = vpop.permute.xlu0 %768
        %802 = vrot.lane.b32.xlu0 %v334, 16
        %v803 = vpop.permute.xlu0 %802
        %804 = vrot.lane.b32.xlu0 %v336, 16
        %v805 = vpop.permute.xlu0 %804
        %806 = vrot.lane.b32.xlu0 %v339, 16
        %v807 = vpop.permute.xlu0 %806
        %808 = vrot.lane.b32.xlu0 %v341, 16
        %v809 = vpop.permute.xlu0 %808
        %810 = vrot.lane.b32.xlu0 %v344, 16
        %v811 = vpop.permute.xlu0 %810
        %812 = vrot.lane.b32.xlu0 %v346, 16
        %v813 = vpop.permute.xlu0 %812
        %814 = vrot.lane.b32.xlu0 %v349, 16
        %v815 = vpop.permute.xlu0 %814
        %816 = vrot.lane.b32.xlu0 %v351, 16
        %v817 = vpop.permute.xlu0 %816
        %818 = vrot.lane.b32.xlu0 %v354, 16
        %v819 = vpop.permute.xlu0 %818
        %820 = vrot.lane.b32.xlu0 %v356, 16
        %v821 = vpop.permute.xlu0 %820
        %822 = vrot.lane.b32.xlu0 %v359, 16
        %v823 = vpop.permute.xlu0 %822
        %824 = vrot.lane.b32.xlu0 %v361, 16
        %v825 = vpop.permute.xlu0 %824
        %826 = vrot.lane.b32.xlu0 %v364, 16
        %v827 = vpop.permute.xlu0 %826
        %828 = vrot.lane.b32.xlu0 %v366, 16
        %v829 = vpop.permute.xlu0 %828
        %830 = vrot.lane.b32.xlu0 %v369, 16
        %v831 = vpop.permute.xlu0 %830
        %832 = vrot.lane.b32.xlu0 %v371, 16
        %v833 = vpop.permute.xlu0 %832
        %834 = vrot.lane.b32.xlu0 %v374, 16
        %v835 = vpop.permute.xlu0 %834
        %836 = vrot.lane.b32.xlu0 %v376, 16
        %v837 = vpop.permute.xlu0 %836
        %838 = vrot.lane.b32.xlu0 %v379, 16
        %v839 = vpop.permute.xlu0 %838
        %840 = vrot.lane.b32.xlu0 %v381, 16
        %v841 = vpop.permute.xlu0 %840
        %842 = vrot.lane.b32.xlu0 %v384, 16
        %v843 = vpop.permute.xlu0 %842
        %844 = vrot.lane.b32.xlu0 %v386, 16
        %v845 = vpop.permute.xlu0 %844
        %846 = vrot.lane.b32.xlu0 %v389, 16
        %v847 = vpop.permute.xlu0 %846
        %848 = vrot.lane.b32.xlu0 %v391, 16
        %v849 = vpop.permute.xlu0 %848
        %850 = vrot.lane.b32.xlu0 %v394, 16
        %v851 = vpop.permute.xlu0 %850
        %852 = vrot.lane.b32.xlu0 %v396, 16
        %v853 = vpop.permute.xlu0 %852
        %854 = vrot.lane.b32.xlu0 %v399, 16
        %v855 = vpop.permute.xlu0 %854
        %856 = vrot.lane.b32.xlu0 %v401, 16
        %v857 = vpop.permute.xlu0 %856
        %858 = vrot.lane.b32.xlu0 %v404, 16
        %v859 = vpop.permute.xlu0 %858
        %860 = vrot.lane.b32.xlu0 %v406, 16
        %v861 = vpop.permute.xlu0 %860
        %862 = vrot.lane.b32.xlu0 %v493, 16
        %v863 = vpop.permute.xlu0 %862
        %864 = vrot.lane.b32.xlu0 %v495, 16
        %v865 = vpop.permute.xlu0 %864
        %898 = vrot.lane.b32.xlu0 %v415, 20
        %v899 = vpop.permute.xlu0 %898
        %900 = vrot.lane.b32.xlu0 %v417, 20
        %v901 = vpop.permute.xlu0 %900
        %902 = vrot.lane.b32.xlu0 %v420, 20
        %v903 = vpop.permute.xlu0 %902
        %904 = vrot.lane.b32.xlu0 %v422, 20
        %v905 = vpop.permute.xlu0 %904
        %906 = vrot.lane.b32.xlu0 %v425, 20
        %v907 = vpop.permute.xlu0 %906
        %908 = vrot.lane.b32.xlu0 %v427, 20
        %v909 = vpop.permute.xlu0 %908
        %910 = vrot.lane.b32.xlu0 %v430, 20
        %v911 = vpop.permute.xlu0 %910
        %912 = vrot.lane.b32.xlu0 %v432, 20
        %v913 = vpop.permute.xlu0 %912
        %914 = vrot.lane.b32.xlu0 %v435, 20
        %v915 = vpop.permute.xlu0 %914
        %916 = vrot.lane.b32.xlu0 %v437, 20
        %v917 = vpop.permute.xlu0 %916
        %918 = vrot.lane.b32.xlu0 %v440, 20
        %v919 = vpop.permute.xlu0 %918
        %920 = vrot.lane.b32.xlu0 %v442, 20
        %v921 = vpop.permute.xlu0 %920
        %922 = vrot.lane.b32.xlu0 %v445, 20
        %v923 = vpop.permute.xlu0 %922
        %924 = vrot.lane.b32.xlu0 %v447, 20
        %v925 = vpop.permute.xlu0 %924
        %926 = vrot.lane.b32.xlu0 %v450, 20
        %v927 = vpop.permute.xlu0 %926
        %928 = vrot.lane.b32.xlu0 %v452, 20
        %v929 = vpop.permute.xlu0 %928
        %930 = vrot.lane.b32.xlu0 %v455, 20
        %v931 = vpop.permute.xlu0 %930
        %932 = vrot.lane.b32.xlu0 %v457, 20
        %v933 = vpop.permute.xlu0 %932
        %934 = vrot.lane.b32.xlu0 %v460, 20
        %v935 = vpop.permute.xlu0 %934
        %936 = vrot.lane.b32.xlu0 %v462, 20
        %v937 = vpop.permute.xlu0 %936
        %938 = vrot.lane.b32.xlu0 %v465, 20
        %v939 = vpop.permute.xlu0 %938
        %940 = vrot.lane.b32.xlu0 %v467, 20
        %v941 = vpop.permute.xlu0 %940
        %942 = vrot.lane.b32.xlu0 %v470, 20
        %v943 = vpop.permute.xlu0 %942
        %944 = vrot.lane.b32.xlu0 %v472, 20
        %v945 = vpop.permute.xlu0 %944
        %946 = vrot.lane.b32.xlu0 %v475, 20
        %v947 = vpop.permute.xlu0 %946
        %948 = vrot.lane.b32.xlu0 %v477, 20
        %v949 = vpop.permute.xlu0 %948
        %950 = vrot.lane.b32.xlu0 %v480, 20
        %v951 = vpop.permute.xlu0 %950
        %952 = vrot.lane.b32.xlu0 %v482, 20
        %v953 = vpop.permute.xlu0 %952
        %954 = vrot.lane.b32.xlu0 %v485, 20
        %v955 = vpop.permute.xlu0 %954
        %956 = vrot.lane.b32.xlu0 %v487, 20
        %v957 = vpop.permute.xlu0 %956
        %958 = vrot.lane.b32.xlu0 %v498, 20
        %v959 = vpop.permute.xlu0 %958
        %960 = vrot.lane.b32.xlu0 %v500, 20
        %v961 = vpop.permute.xlu0 %960
        %994 = vrot.lane.b32.xlu0 %v230, 24
        %v995 = vpop.permute.xlu0 %994
        %996 = vrot.lane.b32.xlu0 %v231, 24
        %v997 = vpop.permute.xlu0 %996
        %998 = vrot.lane.b32.xlu0 %v233, 24
        %v999 = vpop.permute.xlu0 %998
        %1000 = vrot.lane.b32.xlu0 %v234, 24
        %v1001 = vpop.permute.xlu0 %1000
        %1002 = vrot.lane.b32.xlu0 %v236, 24
        %v1003 = vpop.permute.xlu0 %1002
        %1004 = vrot.lane.b32.xlu0 %v237, 24
        %v1005 = vpop.permute.xlu0 %1004
        %1006 = vrot.lane.b32.xlu0 %v239, 24
        %v1007 = vpop.permute.xlu0 %1006
        %1008 = vrot.lane.b32.xlu0 %v240, 24
        %v1009 = vpop.permute.xlu0 %1008
        %1010 = vrot.lane.b32.xlu0 %v242, 24
        %v1011 = vpop.permute.xlu0 %1010
        %1012 = vrot.lane.b32.xlu0 %v243, 24
        %v1013 = vpop.permute.xlu0 %1012
        %1014 = vrot.lane.b32.xlu0 %v245, 24
        %v1015 = vpop.permute.xlu0 %1014
        %1016 = vrot.lane.b32.xlu0 %v246, 24
        %v1017 = vpop.permute.xlu0 %1016
        %1018 = vrot.lane.b32.xlu0 %v248, 24
        %v1019 = vpop.permute.xlu0 %1018
        %1020 = vrot.lane.b32.xlu0 %v249, 24
        %v1021 = vpop.permute.xlu0 %1020
        %1022 = vrot.lane.b32.xlu0 %v251, 24
        %v1023 = vpop.permute.xlu0 %1022
        %1024 = vrot.lane.b32.xlu0 %v252, 24
        %v1025 = vpop.permute.xlu0 %1024
        %1026 = vrot.lane.b32.xlu0 %v254, 24
        %v1027 = vpop.permute.xlu0 %1026
        %1028 = vrot.lane.b32.xlu0 %v255, 24
        %v1029 = vpop.permute.xlu0 %1028
        %1030 = vrot.lane.b32.xlu0 %v257, 24
        %v1031 = vpop.permute.xlu0 %1030
        %1032 = vrot.lane.b32.xlu0 %v258, 24
        %v1033 = vpop.permute.xlu0 %1032
        %1034 = vrot.lane.b32.xlu0 %v260, 24
        %v1035 = vpop.permute.xlu0 %1034
        %1036 = vrot.lane.b32.xlu0 %v261, 24
        %v1037 = vpop.permute.xlu0 %1036
        %1038 = vrot.lane.b32.xlu0 %v263, 24
        %v1039 = vpop.permute.xlu0 %1038
        %1040 = vrot.lane.b32.xlu0 %v264, 24
        %v1041 = vpop.permute.xlu0 %1040
        %1042 = vrot.lane.b32.xlu0 %v266, 24
        %v1043 = vpop.permute.xlu0 %1042
        %1044 = vrot.lane.b32.xlu0 %v267, 24
        %v1045 = vpop.permute.xlu0 %1044
        %1046 = vrot.lane.b32.xlu0 %v269, 24
        %v1047 = vpop.permute.xlu0 %1046
        %1048 = vrot.lane.b32.xlu0 %v270, 24
        %v1049 = vpop.permute.xlu0 %1048
        %1050 = vrot.lane.b32.xlu0 %v272, 24
        %v1051 = vpop.permute.xlu0 %1050
        %1052 = vrot.lane.b32.xlu0 %v273, 24
        %v1053 = vpop.permute.xlu0 %1052
        %1054 = vrot.lane.b32.xlu0 %v275, 24
        %v1055 = vpop.permute.xlu0 %1054
        %1056 = vrot.lane.b32.xlu0 %v276, 24
        %v1057 = vpop.permute.xlu0 %1056
        %1090 = vrot.lane.b32.xlu0 %v339, 28
        %v1091 = vpop.permute.xlu0 %1090
        %1092 = vrot.lane.b32.xlu0 %v341, 28
        %v1093 = vpop.permute.xlu0 %1092
        %1094 = vrot.lane.b32.xlu0 %v344, 28
        %v1095 = vpop.permute.xlu0 %1094
        %1096 = vrot.lane.b32.xlu0 %v346, 28
        %v1097 = vpop.permute.xlu0 %1096
        %1098 = vrot.lane.b32.xlu0 %v349, 28
        %v1099 = vpop.permute.xlu0 %1098
        %1100 = vrot.lane.b32.xlu0 %v351, 28
        %v1101 = vpop.permute.xlu0 %1100
        %1102 = vrot.lane.b32.xlu0 %v354, 28
        %v1103 = vpop.permute.xlu0 %1102
        %1104 = vrot.lane.b32.xlu0 %v356, 28
        %v1105 = vpop.permute.xlu0 %1104
        %1106 = vrot.lane.b32.xlu0 %v359, 28
        %v1107 = vpop.permute.xlu0 %1106
        %1108 = vrot.lane.b32.xlu0 %v361, 28
        %v1109 = vpop.permute.xlu0 %1108
        %1110 = vrot.lane.b32.xlu0 %v364, 28
        %v1111 = vpop.permute.xlu0 %1110
        %1112 = vrot.lane.b32.xlu0 %v366, 28
        %v1113 = vpop.permute.xlu0 %1112
        %1114 = vrot.lane.b32.xlu0 %v369, 28
        %v1115 = vpop.permute.xlu0 %1114
        %1116 = vrot.lane.b32.xlu0 %v371, 28
        %v1117 = vpop.permute.xlu0 %1116
        %1118 = vrot.lane.b32.xlu0 %v374, 28
        %v1119 = vpop.permute.xlu0 %1118
        %1120 = vrot.lane.b32.xlu0 %v376, 28
        %v1121 = vpop.permute.xlu0 %1120
        %1122 = vrot.lane.b32.xlu0 %v379, 28
        %v1123 = vpop.permute.xlu0 %1122
        %1124 = vrot.lane.b32.xlu0 %v381, 28
        %v1125 = vpop.permute.xlu0 %1124
        %1126 = vrot.lane.b32.xlu0 %v384, 28
        %v1127 = vpop.permute.xlu0 %1126
        %1128 = vrot.lane.b32.xlu0 %v386, 28
        %v1129 = vpop.permute.xlu0 %1128
        %1130 = vrot.lane.b32.xlu0 %v389, 28
        %v1131 = vpop.permute.xlu0 %1130
        %1132 = vrot.lane.b32.xlu0 %v391, 28
        %v1133 = vpop.permute.xlu0 %1132
        %1134 = vrot.lane.b32.xlu0 %v394, 28
        %v1135 = vpop.permute.xlu0 %1134
        %1136 = vrot.lane.b32.xlu0 %v396, 28
        %v1137 = vpop.permute.xlu0 %1136
        %1138 = vrot.lane.b32.xlu0 %v399, 28
        %v1139 = vpop.permute.xlu0 %1138
        %1140 = vrot.lane.b32.xlu0 %v401, 28
        %v1141 = vpop.permute.xlu0 %1140
        %1142 = vrot.lane.b32.xlu0 %v404, 28
        %v1143 = vpop.permute.xlu0 %1142
        %1144 = vrot.lane.b32.xlu0 %v406, 28
        %v1145 = vpop.permute.xlu0 %1144
        %1146 = vrot.lane.b32.xlu0 %v493, 28
        %v1147 = vpop.permute.xlu0 %1146
        %1148 = vrot.lane.b32.xlu0 %v495, 28
        %v1149 = vpop.permute.xlu0 %1148
        %1150 = vrot.lane.b32.xlu0 %v506, 28
        %v1151 = vpop.permute.xlu0 %1150
        %1152 = vrot.lane.b32.xlu0 %v508, 28
        %v1153 = vpop.permute.xlu0 %1152
        %1186 = vrot.lane.b32.xlu0 %v420, 32
        %v1187 = vpop.permute.xlu0 %1186
        %1188 = vrot.lane.b32.xlu0 %v422, 32
        %v1189 = vpop.permute.xlu0 %1188
        %1190 = vrot.lane.b32.xlu0 %v425, 32
        %v1191 = vpop.permute.xlu0 %1190
        %1192 = vrot.lane.b32.xlu0 %v427, 32
        %v1193 = vpop.permute.xlu0 %1192
        %1194 = vrot.lane.b32.xlu0 %v430, 32
        %v1195 = vpop.permute.xlu0 %1194
        %1196 = vrot.lane.b32.xlu0 %v432, 32
        %v1197 = vpop.permute.xlu0 %1196
        %1198 = vrot.lane.b32.xlu0 %v435, 32
        %v1199 = vpop.permute.xlu0 %1198
        %1200 = vrot.lane.b32.xlu0 %v437, 32
        %v1201 = vpop.permute.xlu0 %1200
        %1202 = vrot.lane.b32.xlu0 %v440, 32
        %v1203 = vpop.permute.xlu0 %1202
        %1204 = vrot.lane.b32.xlu0 %v442, 32
        %v1205 = vpop.permute.xlu0 %1204
        %1206 = vrot.lane.b32.xlu0 %v445, 32
        %v1207 = vpop.permute.xlu0 %1206
        %1208 = vrot.lane.b32.xlu0 %v447, 32
        %v1209 = vpop.permute.xlu0 %1208
        %1210 = vrot.lane.b32.xlu0 %v450, 32
        %v1211 = vpop.permute.xlu0 %1210
        %1212 = vrot.lane.b32.xlu0 %v452, 32
        %v1213 = vpop.permute.xlu0 %1212
        %1214 = vrot.lane.b32.xlu0 %v455, 32
        %v1215 = vpop.permute.xlu0 %1214
        %1216 = vrot.lane.b32.xlu0 %v457, 32
        %v1217 = vpop.permute.xlu0 %1216
        %1218 = vrot.lane.b32.xlu0 %v460, 32
        %v1219 = vpop.permute.xlu0 %1218
        %1220 = vrot.lane.b32.xlu0 %v462, 32
        %v1221 = vpop.permute.xlu0 %1220
        %1222 = vrot.lane.b32.xlu0 %v465, 32
        %v1223 = vpop.permute.xlu0 %1222
        %1224 = vrot.lane.b32.xlu0 %v467, 32
        %v1225 = vpop.permute.xlu0 %1224
        %1226 = vrot.lane.b32.xlu0 %v470, 32
        %v1227 = vpop.permute.xlu0 %1226
        %1228 = vrot.lane.b32.xlu0 %v472, 32
        %v1229 = vpop.permute.xlu0 %1228
        %1230 = vrot.lane.b32.xlu0 %v475, 32
        %v1231 = vpop.permute.xlu0 %1230
        %1232 = vrot.lane.b32.xlu0 %v477, 32
        %v1233 = vpop.permute.xlu0 %1232
        %1234 = vrot.lane.b32.xlu0 %v480, 32
        %v1235 = vpop.permute.xlu0 %1234
        %1236 = vrot.lane.b32.xlu0 %v482, 32
        %v1237 = vpop.permute.xlu0 %1236
        %1238 = vrot.lane.b32.xlu0 %v485, 32
        %v1239 = vpop.permute.xlu0 %1238
        %1240 = vrot.lane.b32.xlu0 %v487, 32
        %v1241 = vpop.permute.xlu0 %1240
        %1242 = vrot.lane.b32.xlu0 %v498, 32
        %v1243 = vpop.permute.xlu0 %1242
        %1244 = vrot.lane.b32.xlu0 %v500, 32
        %v1245 = vpop.permute.xlu0 %1244
        %1246 = vrot.lane.b32.xlu0 %v511, 32
        %v1247 = vpop.permute.xlu0 %1246
        %1248 = vrot.lane.b32.xlu0 %v513, 32
        %v1249 = vpop.permute.xlu0 %1248
        %vm1282 = vcmask 31744
        %v1283 = vsel %vm1282, %v224, %v515
        %v1284 = vsel %vm1282, %v225, %v517
        %v1285 = vsel %vm1282, %v227, %v519
        %v1286 = vsel %vm1282, %v228, %v521
        %v1287 = vsel %vm1282, %v230, %v523
        %v1288 = vsel %vm1282, %v231, %v525
        %v1289 = vsel %vm1282, %v233, %v527
        %v1290 = vsel %vm1282, %v234, %v529
        %v1291 = vsel %vm1282, %v236, %v531
        %v1292 = vsel %vm1282, %v237, %v533
        %v1293 = vsel %vm1282, %v239, %v535
        %v1294 = vsel %vm1282, %v240, %v537
        %v1295 = vsel %vm1282, %v242, %v539
        %v1296 = vsel %vm1282, %v243, %v541
        %v1297 = vsel %vm1282, %v245, %v543
        %v1298 = vsel %vm1282, %v246, %v545
        %v1299 = vsel %vm1282, %v248, %v547
        %v1300 = vsel %vm1282, %v249, %v549
        %v1301 = vsel %vm1282, %v251, %v551
        %v1302 = vsel %vm1282, %v252, %v553
        %v1303 = vsel %vm1282, %v254, %v555
        %v1304 = vsel %vm1282, %v255, %v557
        %v1305 = vsel %vm1282, %v257, %v559
        %v1306 = vsel %vm1282, %v258, %v561
        %v1307 = vsel %vm1282, %v260, %v563
        %v1308 = vsel %vm1282, %v261, %v565
        %v1309 = vsel %vm1282, %v263, %v567
        %v1310 = vsel %vm1282, %v264, %v569
        %v1311 = vsel %vm1282, %v266, %v571
        %v1312 = vsel %vm1282, %v267, %v573
        %v1313 = vsel %vm1282, %v269, %v575
        %v1314 = vsel %vm1282, %v270, %v577
        %vm1315 = vcmask 64512
        %v1316 = vsel %vm1315, %v1283, %v611
        %v1317 = vsel %vm1315, %v1284, %v613
        %v1318 = vsel %vm1315, %v1285, %v615
        %v1319 = vsel %vm1315, %v1286, %v617
        %v1320 = vsel %vm1315, %v1287, %v619
        %v1321 = vsel %vm1315, %v1288, %v621
        %v1322 = vsel %vm1315, %v1289, %v623
        %v1323 = vsel %vm1315, %v1290, %v625
        %v1324 = vsel %vm1315, %v1291, %v627
        %v1325 = vsel %vm1315, %v1292, %v629
        %v1326 = vsel %vm1315, %v1293, %v631
        %v1327 = vsel %vm1315, %v1294, %v633
        %v1328 = vsel %vm1315, %v1295, %v635
        %v1329 = vsel %vm1315, %v1296, %v637
        %v1330 = vsel %vm1315, %v1297, %v639
        %v1331 = vsel %vm1315, %v1298, %v641
        %v1332 = vsel %vm1315, %v1299, %v643
        %v1333 = vsel %vm1315, %v1300, %v645
        %v1334 = vsel %vm1315, %v1301, %v647
        %v1335 = vsel %vm1315, %v1302, %v649
        %v1336 = vsel %vm1315, %v1303, %v651
        %v1337 = vsel %vm1315, %v1304, %v653
        %v1338 = vsel %vm1315, %v1305, %v655
        %v1339 = vsel %vm1315, %v1306, %v657
        %v1340 = vsel %vm1315, %v1307, %v659
        %v1341 = vsel %vm1315, %v1308, %v661
        %v1342 = vsel %vm1315, %v1309, %v663
        %v1343 = vsel %vm1315, %v1310, %v665
        %v1344 = vsel %vm1315, %v1311, %v667
        %v1345 = vsel %vm1315, %v1312, %v669
        %v1346 = vsel %vm1315, %v1313, %v671
        %v1347 = vsel %vm1315, %v1314, %v673
        %vm1348 = vcmask 97280
        %v1349 = vsel %vm1348, %v1316, %v707
        %v1350 = vsel %vm1348, %v1317, %v709
        %v1351 = vsel %vm1348, %v1318, %v711
        %v1352 = vsel %vm1348, %v1319, %v713
        %v1353 = vsel %vm1348, %v1320, %v715
        %v1354 = vsel %vm1348, %v1321, %v717
        %v1355 = vsel %vm1348, %v1322, %v719
        %v1356 = vsel %vm1348, %v1323, %v721
        %v1357 = vsel %vm1348, %v1324, %v723
        %v1358 = vsel %vm1348, %v1325, %v725
        %v1359 = vsel %vm1348, %v1326, %v727
        %v1360 = vsel %vm1348, %v1327, %v729
        %v1361 = vsel %vm1348, %v1328, %v731
        %v1362 = vsel %vm1348, %v1329, %v733
        %v1363 = vsel %vm1348, %v1330, %v735
        %v1364 = vsel %vm1348, %v1331, %v737
        %v1365 = vsel %vm1348, %v1332, %v739
        %v1366 = vsel %vm1348, %v1333, %v741
        %v1367 = vsel %vm1348, %v1334, %v743
        %v1368 = vsel %vm1348, %v1335, %v745
        %v1369 = vsel %vm1348, %v1336, %v747
        %v1370 = vsel %vm1348, %v1337, %v749
        %v1371 = vsel %vm1348, %v1338, %v751
        %v1372 = vsel %vm1348, %v1339, %v753
        %v1373 = vsel %vm1348, %v1340, %v755
        %v1374 = vsel %vm1348, %v1341, %v757
        %v1375 = vsel %vm1348, %v1342, %v759
        %v1376 = vsel %vm1348, %v1343, %v761
        %v1377 = vsel %vm1348, %v1344, %v763
        %v1378 = vsel %vm1348, %v1345, %v765
        %v1379 = vsel %vm1348, %v1346, %v767
        %v1380 = vsel %vm1348, %v1347, %v769
        %vm1381 = vcmask 130048
        %v1382 = vsel %vm1381, %v1349, %v803
        %v1383 = vsel %vm1381, %v1350, %v805
        %v1384 = vsel %vm1381, %v1351, %v807
        %v1385 = vsel %vm1381, %v1352, %v809
        %v1386 = vsel %vm1381, %v1353, %v811
        %v1387 = vsel %vm1381, %v1354, %v813
        %v1388 = vsel %vm1381, %v1355, %v815
        %v1389 = vsel %vm1381, %v1356, %v817
        %v1390 = vsel %vm1381, %v1357, %v819
        %v1391 = vsel %vm1381, %v1358, %v821
        %v1392 = vsel %vm1381, %v1359, %v823
        %v1393 = vsel %vm1381, %v1360, %v825
        %v1394 = vsel %vm1381, %v1361, %v827
        %v1395 = vsel %vm1381, %v1362, %v829
        %v1396 = vsel %vm1381, %v1363, %v831
        %v1397 = vsel %vm1381, %v1364, %v833
        %v1398 = vsel %vm1381, %v1365, %v835
        %v1399 = vsel %vm1381, %v1366, %v837
        %v1400 = vsel %vm1381, %v1367, %v839
        %v1401 = vsel %vm1381, %v1368, %v841
        %v1402 = vsel %vm1381, %v1369, %v843
        %v1403 = vsel %vm1381, %v1370, %v845
        %v1404 = vsel %vm1381, %v1371, %v847
        %v1405 = vsel %vm1381, %v1372, %v849
        %v1406 = vsel %vm1381, %v1373, %v851
        %v1407 = vsel %vm1381, %v1374, %v853
        %v1408 = vsel %vm1381, %v1375, %v855
        %v1409 = vsel %vm1381, %v1376, %v857
        %v1410 = vsel %vm1381, %v1377, %v859
        %v1411 = vsel %vm1381, %v1378, %v861
        %v1412 = vsel %vm1381, %v1379, %v863
        %v1413 = vsel %vm1381, %v1380, %v865
        %vm1414 = vcmask 162816
        %v1415 = vsel %vm1414, %v1382, %v899
        %v1416 = vsel %vm1414, %v1383, %v901
        %v1417 = vsel %vm1414, %v1384, %v903
        %v1418 = vsel %vm1414, %v1385, %v905
        %v1419 = vsel %vm1414, %v1386, %v907
        %v1420 = vsel %vm1414, %v1387, %v909
        %v1421 = vsel %vm1414, %v1388, %v911
        %v1422 = vsel %vm1414, %v1389, %v913
        %v1423 = vsel %vm1414, %v1390, %v915
        %v1424 = vsel %vm1414, %v1391, %v917
        %v1425 = vsel %vm1414, %v1392, %v919
        %v1426 = vsel %vm1414, %v1393, %v921
        %v1427 = vsel %vm1414, %v1394, %v923
        %v1428 = vsel %vm1414, %v1395, %v925
        %v1429 = vsel %vm1414, %v1396, %v927
        %v1430 = vsel %vm1414, %v1397, %v929
        %v1431 = vsel %vm1414, %v1398, %v931
        %v1432 = vsel %vm1414, %v1399, %v933
        %v1433 = vsel %vm1414, %v1400, %v935
        %v1434 = vsel %vm1414, %v1401, %v937
        %v1435 = vsel %vm1414, %v1402, %v939
        %v1436 = vsel %vm1414, %v1403, %v941
        %v1437 = vsel %vm1414, %v1404, %v943
        %v1438 = vsel %vm1414, %v1405, %v945
        %v1439 = vsel %vm1414, %v1406, %v947
        %v1440 = vsel %vm1414, %v1407, %v949
        %v1441 = vsel %vm1414, %v1408, %v951
        %v1442 = vsel %vm1414, %v1409, %v953
        %v1443 = vsel %vm1414, %v1410, %v955
        %v1444 = vsel %vm1414, %v1411, %v957
        %v1445 = vsel %vm1414, %v1412, %v959
        %v1446 = vsel %vm1414, %v1413, %v961
        %vm1447 = vcmask 195584
        %v1448 = vsel %vm1447, %v1415, %v995
        %v1449 = vsel %vm1447, %v1416, %v997
        %v1450 = vsel %vm1447, %v1417, %v999
        %v1451 = vsel %vm1447, %v1418, %v1001
        %v1452 = vsel %vm1447, %v1419, %v1003
        %v1453 = vsel %vm1447, %v1420, %v1005
        %v1454 = vsel %vm1447, %v1421, %v1007
        %v1455 = vsel %vm1447, %v1422, %v1009
        %v1456 = vsel %vm1447, %v1423, %v1011
        %v1457 = vsel %vm1447, %v1424, %v1013
        %v1458 = vsel %vm1447, %v1425, %v1015
        %v1459 = vsel %vm1447, %v1426, %v1017
        %v1460 = vsel %vm1447, %v1427, %v1019
        %v1461 = vsel %vm1447, %v1428, %v1021
        %v1462 = vsel %vm1447, %v1429, %v1023
        %v1463 = vsel %vm1447, %v1430, %v1025
        %v1464 = vsel %vm1447, %v1431, %v1027
        %v1465 = vsel %vm1447, %v1432, %v1029
        %v1466 = vsel %vm1447, %v1433, %v1031
        %v1467 = vsel %vm1447, %v1434, %v1033
        %v1468 = vsel %vm1447, %v1435, %v1035
        %v1469 = vsel %vm1447, %v1436, %v1037
        %v1470 = vsel %vm1447, %v1437, %v1039
        %v1471 = vsel %vm1447, %v1438, %v1041
        %v1472 = vsel %vm1447, %v1439, %v1043
        %v1473 = vsel %vm1447, %v1440, %v1045
        %v1474 = vsel %vm1447, %v1441, %v1047
        %v1475 = vsel %vm1447, %v1442, %v1049
        %v1476 = vsel %vm1447, %v1443, %v1051
        %v1477 = vsel %vm1447, %v1444, %v1053
        %v1478 = vsel %vm1447, %v1445, %v1055
        %v1479 = vsel %vm1447, %v1446, %v1057
        %vm1480 = vcmask 228352
        %v1481 = vsel %vm1480, %v1448, %v1091
        %v1482 = vsel %vm1480, %v1449, %v1093
        %v1483 = vsel %vm1480, %v1450, %v1095
        %v1484 = vsel %vm1480, %v1451, %v1097
        %v1485 = vsel %vm1480, %v1452, %v1099
        %v1486 = vsel %vm1480, %v1453, %v1101
        %v1487 = vsel %vm1480, %v1454, %v1103
        %v1488 = vsel %vm1480, %v1455, %v1105
        %v1489 = vsel %vm1480, %v1456, %v1107
        %v1490 = vsel %vm1480, %v1457, %v1109
        %v1491 = vsel %vm1480, %v1458, %v1111
        %v1492 = vsel %vm1480, %v1459, %v1113
        %v1493 = vsel %vm1480, %v1460, %v1115
        %v1494 = vsel %vm1480, %v1461, %v1117
        %v1495 = vsel %vm1480, %v1462, %v1119
        %v1496 = vsel %vm1480, %v1463, %v1121
        %v1497 = vsel %vm1480, %v1464, %v1123
        %v1498 = vsel %vm1480, %v1465, %v1125
        %v1499 = vsel %vm1480, %v1466, %v1127
        %v1500 = vsel %vm1480, %v1467, %v1129
        %v1501 = vsel %vm1480, %v1468, %v1131
        %v1502 = vsel %vm1480, %v1469, %v1133
        %v1503 = vsel %vm1480, %v1470, %v1135
        %v1504 = vsel %vm1480, %v1471, %v1137
        %v1505 = vsel %vm1480, %v1472, %v1139
        %v1506 = vsel %vm1480, %v1473, %v1141
        %v1507 = vsel %vm1480, %v1474, %v1143
        %v1508 = vsel %vm1480, %v1475, %v1145
        %v1509 = vsel %vm1480, %v1476, %v1147
        %v1510 = vsel %vm1480, %v1477, %v1149
        %v1511 = vsel %vm1480, %v1478, %v1151
        %v1512 = vsel %vm1480, %v1479, %v1153
        %vm1513 = vcmask 261120
        %v1514 = vsel %vm1513, %v1481, %v1187
        %v1515 = vsel %vm1513, %v1482, %v1189
        %v1516 = vsel %vm1513, %v1483, %v1191
        %v1517 = vsel %vm1513, %v1484, %v1193
        %v1518 = vsel %vm1513, %v1485, %v1195
        %v1519 = vsel %vm1513, %v1486, %v1197
        %v1520 = vsel %vm1513, %v1487, %v1199
        %v1521 = vsel %vm1513, %v1488, %v1201
        %v1522 = vsel %vm1513, %v1489, %v1203
        %v1523 = vsel %vm1513, %v1490, %v1205
        %v1524 = vsel %vm1513, %v1491, %v1207
        %v1525 = vsel %vm1513, %v1492, %v1209
        %v1526 = vsel %vm1513, %v1493, %v1211
        %v1527 = vsel %vm1513, %v1494, %v1213
        %v1528 = vsel %vm1513, %v1495, %v1215
        %v1529 = vsel %vm1513, %v1496, %v1217
        %v1530 = vsel %vm1513, %v1497, %v1219
        %v1531 = vsel %vm1513, %v1498, %v1221
        %v1532 = vsel %vm1513, %v1499, %v1223
        %v1533 = vsel %vm1513, %v1500, %v1225
        %v1534 = vsel %vm1513, %v1501, %v1227
        %v1535 = vsel %vm1513, %v1502, %v1229
        %v1536 = vsel %vm1513, %v1503, %v1231
        %v1537 = vsel %vm1513, %v1504, %v1233
        %v1538 = vsel %vm1513, %v1505, %v1235
        %v1539 = vsel %vm1513, %v1506, %v1237
        %v1540 = vsel %vm1513, %v1507, %v1239
        %v1541 = vsel %vm1513, %v1508, %v1241
        %v1542 = vsel %vm1513, %v1509, %v1243
        %v1543 = vsel %vm1513, %v1510, %v1245
        %v1544 = vsel %vm1513, %v1511, %v1247
        %v1545 = vsel %vm1513, %v1512, %v1249
        %v1546 = vpack.c.bf16 %v1515, %v1514
        %v1547 = vpack.c.bf16 %v1517, %v1516
        %v1548 = vpack.c.bf16 %v1519, %v1518
        %v1549 = vpack.c.bf16 %v1521, %v1520
        %v1550 = vpack.c.bf16 %v1523, %v1522
        %v1551 = vpack.c.bf16 %v1525, %v1524
        %v1552 = vpack.c.bf16 %v1527, %v1526
        %v1553 = vpack.c.bf16 %v1529, %v1528
        %v1554 = vpack.c.bf16 %v1531, %v1530
        %v1555 = vpack.c.bf16 %v1533, %v1532
        %v1556 = vpack.c.bf16 %v1535, %v1534
        %v1557 = vpack.c.bf16 %v1537, %v1536
        %v1558 = vpack.c.bf16 %v1539, %v1538
        %v1559 = vpack.c.bf16 %v1541, %v1540
        %v1560 = vpack.c.bf16 %v1543, %v1542
        %v1561 = vpack.c.bf16 %v1545, %v1544
        %v1562 = vld [vmem:[%s1] sm:$0xf]
        %v1563 = vld [vmem:[%s1 + $0x4] sm:$0xf]
        %v1564 = vld [vmem:[%s1 + $0x8] sm:$0xf]
        %v1565 = vld [vmem:[%s1 + $0xc] sm:$0xf]
        %v1566 = vld [vmem:[%s1 + $0x10] sm:$0x3]
        %v1567 = vld [vmem:[%s2] sm:$0x1]
        %v1569 = vperm.slane %v1567, 0
        %v1576 = vunpack.c.l.b16 %v1562
        %v1577 = vunpack.c.l.b16 %v1563
        %v1578 = vunpack.c.l.b16 %v1564
        %v1579 = vunpack.c.l.b16 %v1565
        %v1580 = vunpack.c.l.b16 %v1566
        %v1581 = vpack.c.b16 %v1577, %v1576
        %v1582 = vpack.c.b16 %v1579, %v1578
        %v1583 = vpack.c.b16 %v1580, %v1580
        %vm1586 = vcmask 293888
        %v1588 = vsel %vm1586, %v1546, 0
        %v1591 = vsel %vm1586, %v1547, 0
        %v1594 = vsel %vm1586, %v1548, 0
        %v1597 = vsel %vm1586, %v1549, 0
        %v1600 = vsel %vm1586, %v1550, 0
        %v1603 = vsel %vm1586, %v1551, 0
        %v1606 = vsel %vm1586, %v1552, 0
        %v1609 = vsel %vm1586, %v1553, 0
        %v1612 = vsel %vm1586, %v1554, 0
        %v1615 = vsel %vm1586, %v1555, 0
        %v1618 = vsel %vm1586, %v1556, 0
        %v1621 = vsel %vm1586, %v1557, 0
        %v1624 = vsel %vm1586, %v1558, 0
        %v1627 = vsel %vm1586, %v1559, 0
        %v1630 = vsel %vm1586, %v1560, 0
        %v1633 = vsel %vm1586, %v1561, 0
        %vm1635 = vcmask 1041408
        %v1637 = vsel %vm1635, %v1583, 0
        %1639 = vmatpush.bf16.msra.mxu0 0
        %1640 = vmatpush.bf16.msra.mxu0 0
        %1641 = vmatpush.bf16.msra.mxu0 0
        %1642 = vmatpush.bf16.msra.mxu0 0
        %1643 = vmatpush.bf16.msra.mxu0 0
        %1644 = vmatpush.bf16.msra.mxu0 %v1637
        %1645 = vmatpush.bf16.msra.mxu0 %v1582
        %1646 = vmatpush.bf16.msra.mxu0 %v1581
        %1647 = vmatmul.bf16.gmra.mxu0 %v1588
        %v1648 = vpop.f32.mrf.mxu0
        %v1649 = vadd.f32 %v1569, %v1648
        %v1650 = vpop.f32.mrf.mxu0
        %v1651 = vadd.f32 %v1569, %v1650
        %1652 = vmatmul.bf16.gmra.mxu0 %v1591
        %v1653 = vpop.f32.mrf.mxu0
        %v1654 = vadd.f32 %v1569, %v1653
        %v1655 = vpop.f32.mrf.mxu0
        %v1656 = vadd.f32 %v1569, %v1655
        %1657 = vmatmul.bf16.gmra.mxu0 %v1594
        %v1658 = vpop.f32.mrf.mxu0
        %v1659 = vadd.f32 %v1569, %v1658
        %v1660 = vpop.f32.mrf.mxu0
        %v1661 = vadd.f32 %v1569, %v1660
        %1662 = vmatmul.bf16.gmra.mxu0 %v1597
        %v1663 = vpop.f32.mrf.mxu0
        %v1664 = vadd.f32 %v1569, %v1663
        %v1665 = vpop.f32.mrf.mxu0
        %v1666 = vadd.f32 %v1569, %v1665
        %1667 = vmatmul.bf16.gmra.mxu0 %v1600
        %v1668 = vpop.f32.mrf.mxu0
        %v1669 = vadd.f32 %v1569, %v1668
        %v1670 = vpop.f32.mrf.mxu0
        %v1671 = vadd.f32 %v1569, %v1670
        %1672 = vmatmul.bf16.gmra.mxu0 %v1603
        %v1673 = vpop.f32.mrf.mxu0
        %v1674 = vadd.f32 %v1569, %v1673
        %v1675 = vpop.f32.mrf.mxu0
        %v1676 = vadd.f32 %v1569, %v1675
        %1677 = vmatmul.bf16.gmra.mxu0 %v1606
        %v1678 = vpop.f32.mrf.mxu0
        %v1679 = vadd.f32 %v1569, %v1678
        %v1680 = vpop.f32.mrf.mxu0
        %v1681 = vadd.f32 %v1569, %v1680
        %1682 = vmatmul.bf16.gmra.mxu0 %v1609
        %v1683 = vpop.f32.mrf.mxu0
        %v1684 = vadd.f32 %v1569, %v1683
        %v1685 = vpop.f32.mrf.mxu0
        %v1686 = vadd.f32 %v1569, %v1685
        %1687 = vmatmul.bf16.gmra.mxu0 %v1612
        %v1688 = vpop.f32.mrf.mxu0
        %v1689 = vadd.f32 %v1569, %v1688
        %v1690 = vpop.f32.mrf.mxu0
        %v1691 = vadd.f32 %v1569, %v1690
        %1692 = vmatmul.bf16.gmra.mxu0 %v1615
        %v1693 = vpop.f32.mrf.mxu0
        %v1694 = vadd.f32 %v1569, %v1693
        %v1695 = vpop.f32.mrf.mxu0
        %v1696 = vadd.f32 %v1569, %v1695
        %1697 = vmatmul.bf16.gmra.mxu0 %v1618
        %v1698 = vpop.f32.mrf.mxu0
        %v1699 = vadd.f32 %v1569, %v1698
        %v1700 = vpop.f32.mrf.mxu0
        %v1701 = vadd.f32 %v1569, %v1700
        %1702 = vmatmul.bf16.gmra.mxu0 %v1621
        %v1703 = vpop.f32.mrf.mxu0
        %v1704 = vadd.f32 %v1569, %v1703
        %v1705 = vpop.f32.mrf.mxu0
        %v1706 = vadd.f32 %v1569, %v1705
        %1707 = vmatmul.bf16.gmra.mxu0 %v1624
        %v1708 = vpop.f32.mrf.mxu0
        %v1709 = vadd.f32 %v1569, %v1708
        %v1710 = vpop.f32.mrf.mxu0
        %v1711 = vadd.f32 %v1569, %v1710
        %1712 = vmatmul.bf16.gmra.mxu0 %v1627
        %v1713 = vpop.f32.mrf.mxu0
        %v1714 = vadd.f32 %v1569, %v1713
        %v1715 = vpop.f32.mrf.mxu0
        %v1716 = vadd.f32 %v1569, %v1715
        %1717 = vmatmul.bf16.gmra.mxu0 %v1630
        %v1718 = vpop.f32.mrf.mxu0
        %v1719 = vadd.f32 %v1569, %v1718
        %v1720 = vpop.f32.mrf.mxu0
        %v1721 = vadd.f32 %v1569, %v1720
        %1722 = vmatmul.bf16.gmra.mxu0 %v1633
        %v1723 = vpop.f32.mrf.mxu0
        %v1724 = vadd.f32 %v1569, %v1723
        %v1725 = vpop.f32.mrf.mxu0
        %v1726 = vadd.f32 %v1569, %v1725
        %1727 = vdwg.mxu0
        %1728 = vxpose.xlu0.b32.start [1/16] %v1649, 128
        %1729 = vxpose.xlu0.b32.cont [2/16] %v1651, 128
        %1730 = vxpose.xlu0.b32.cont [3/16] %v1654, 128
        %1731 = vxpose.xlu0.b32.cont [4/16] %v1656, 128
        %1732 = vxpose.xlu0.b32.cont [5/16] %v1659, 128
        %1733 = vxpose.xlu0.b32.cont [6/16] %v1661, 128
        %1734 = vxpose.xlu0.b32.cont [7/16] %v1664, 128
        %1735 = vxpose.xlu0.b32.cont [8/16] %v1666, 128
        %1736 = vxpose.xlu0.b32.cont [9/16] %v1669, 128
        %1737 = vxpose.xlu0.b32.cont [10/16] %v1671, 128
        %1738 = vxpose.xlu0.b32.cont [11/16] %v1674, 128
        %1739 = vxpose.xlu0.b32.cont [12/16] %v1676, 128
        %1740 = vxpose.xlu0.b32.cont [13/16] %v1679, 128
        %1741 = vxpose.xlu0.b32.cont [14/16] %v1681, 128
        %1742 = vxpose.xlu0.b32.cont [15/16] %v1684, 128
        %1743 = vxpose.xlu0.b32.end [16/16] %v1686, 128
        %v1744 = vpop.trf.xlu0
        %v1745 = vpop.trf.xlu0
        %v1746 = vpop.trf.xlu0
        %v1747 = vpop.trf.xlu0
        %v1748 = vpop.trf.xlu0
        %v1749 = vpop.trf.xlu0
        %v1750 = vpop.trf.xlu0
        %v1751 = vpop.trf.xlu0
        %v1752 = vpop.trf.xlu0
        %v1753 = vpop.trf.xlu0
        %v1754 = vpop.trf.xlu0
        %v1755 = vpop.trf.xlu0
        %v1756 = vpop.trf.xlu0
        %v1757 = vpop.trf.xlu0
        %v1758 = vpop.trf.xlu0
        %v1759 = vpop.trf.xlu0
        %1760 = vxpose.xlu0.b32.start [1/16] %v1689, 128
        %1761 = vxpose.xlu0.b32.cont [2/16] %v1691, 128
        %1762 = vxpose.xlu0.b32.cont [3/16] %v1694, 128
        %1763 = vxpose.xlu0.b32.cont [4/16] %v1696, 128
        %1764 = vxpose.xlu0.b32.cont [5/16] %v1699, 128
        %1765 = vxpose.xlu0.b32.cont [6/16] %v1701, 128
        %1766 = vxpose.xlu0.b32.cont [7/16] %v1704, 128
        %1767 = vxpose.xlu0.b32.cont [8/16] %v1706, 128
        %1768 = vxpose.xlu0.b32.cont [9/16] %v1709, 128
        %1769 = vxpose.xlu0.b32.cont [10/16] %v1711, 128
        %1770 = vxpose.xlu0.b32.cont [11/16] %v1714, 128
        %1771 = vxpose.xlu0.b32.cont [12/16] %v1716, 128
        %1772 = vxpose.xlu0.b32.cont [13/16] %v1719, 128
        %1773 = vxpose.xlu0.b32.cont [14/16] %v1721, 128
        %1774 = vxpose.xlu0.b32.cont [15/16] %v1724, 128
        %1775 = vxpose.xlu0.b32.end [16/16] %v1726, 128
        %v1776 = vpop.trf.xlu0
        %v1777 = vpop.trf.xlu0
        %v1778 = vpop.trf.xlu0
        %v1779 = vpop.trf.xlu0
        %v1780 = vpop.trf.xlu0
        %v1781 = vpop.trf.xlu0
        %v1782 = vpop.trf.xlu0
        %v1783 = vpop.trf.xlu0
        %v1784 = vpop.trf.xlu0
        %v1785 = vpop.trf.xlu0
        %v1786 = vpop.trf.xlu0
        %v1787 = vpop.trf.xlu0
        %v1788 = vpop.trf.xlu0
        %v1789 = vpop.trf.xlu0
        %v1790 = vpop.trf.xlu0
        %v1791 = vpop.trf.xlu0
        %1792 = vst [vmem:[%s163] sm:$0xff] %v1744
        %1793 = vst [vmem:[%s163 + $0x8] sm:$0xff] %v1776
        %s1794 = sand.u32 %s93, 1
        %s1795 = scalar_lea.sflag [#allocation3], %s1794
        %s1796 = sand.u32 %s93, 1
        %s1797 = smul.addr %s1796, 16
        %s1798 = scalar_lea.vmem [#allocation2], %s1797
        // Predicated region
        $region33: #{tpu_custom_call.1} parent=31 // pred_check
          %p1799 = pneg %p103
        $region34: #{tpu_custom_call.1} parent=31 // pred_check_branch
          %1801 = sbr.rel (%p1799) target = $region36
        $region35: #{tpu_custom_call.1} parent=31 // pred_region
          %1803 = vsyncadd %s1795, 0
          %s1804 = smul.addr %s17, 2
          %s1805 = smul.addr %s1804, 8
          %s1806 = scalar_lea.hbm %s3, %s1805
          %s1808 = sshll.u32 %s1798, 4
          %s1809 = int_to_ptr.vmem [resolvable:$true] %s1808
          %s1810 = sshll.u32 %s1806, 4
          %s1811 = int_to_ptr.hbm [resolvable:$true] %s1810
          %1813 = dma.vmem_to_hbm [thread:$0]  %s1809, 256, %s1811, %s1795
        $region36: #{tpu_custom_call.1} parent=31 // pred_fallthru
          _
      $region32: #{tpu_custom_call.1} parent=5 // pred_fallthru
        _
      %p1814 = scmp.le.s32.totalorder 2, %s12
      // Predicated region
      $region37: #{tpu_custom_call.1} parent=5 // pred_check
        %p1815 = pneg %p1814
      $region38: #{tpu_custom_call.1} parent=5 // pred_check_branch
        %1817 = sbr.rel (%p1815) target = $region40
      $region39: #{tpu_custom_call.1} parent=5 // pred_region
        %s1818 = ssub.s32 %s12, 2
        // Predicated region
        $region41: #{tpu_custom_call.1} parent=39 // pred_check
          %p1819 = pneg %p109
        $region42: #{tpu_custom_call.1} parent=39 // pred_check_branch
          %1821 = sbr.rel (%p1819) target = $region44
        $region43: #{tpu_custom_call.1} parent=39 // pred_region
          %s1822 = sand.u32 %s94, 1
          %s1823 = scalar_lea.sflag [#allocation3], %s1822
          %s1824 = sand.u32 %s94, 1
          %s1825 = smul.addr %s1824, 16
          %s1826 = scalar_lea.vmem [#allocation2], %s1825
          %1828 = dma.done %s1823, 256
        $region44: #{tpu_custom_call.1} parent=39 // pred_fallthru
          _
      $region40: #{tpu_custom_call.1} parent=5 // pred_fallthru
        _
    $region6: #{tpu_custom_call.1} parent=1 // loop_footer
      %s16 = sadd.s32 1, %s12
    $region7: #{tpu_custom_call.1} parent=1 // loop_footer_branch
      %11 = sbr.rel target = $region3
    $region8: #{tpu_custom_call.1} parent=1 // loop_exit
      _
    %1829 = vsyncpa [#allocation3], 1
    %s1830 = scalar_lea.sflag [#allocation3], 1
    %1831 = vsyncpa %s1830, 1

</llo_original>
